<compile_context>
chip_gen: v7x
topology: tpu7x:2x2x1
jax: 0.10.0
libtpu: 0.0.40
codegen_flags: <defaults>
</compile_context>

<pallas_src>
import functools

import jax
import jax.numpy as jnp
from jax.experimental import pallas as pl
from jax.experimental.pallas import tpu as pltpu

_HP = 128        # hidden dim padded to a full lane width
_CP = 128        # class dim padded to a full lane width
_NEG = -1e30     # bias value for padded (non-existent) classes
_BF16 = jnp.bfloat16
_F32 = jnp.float32


# ----------------------------------------------------------------------------
# Kernel math (shared by the Pallas kernels and the pure-JAX reference)
# ----------------------------------------------------------------------------
def _transform(x, w):
    # Dense GCN transform X @ W (aggregation happens in the next layer call).
    return jnp.dot(x, w, preferred_element_type=_F32)


def _gcn_then_mm(adj_blk, t_full, b, w_next, noise_blk):
    # h = relu(A_hat_blk @ t + b) [* noise]; return h @ W_next (carried forward
    # so the next layer only needs the aggregation / bias / relu epilogue).
    agg = jnp.dot(adj_blk, t_full, preferred_element_type=_F32) + b
    h = jnp.maximum(agg, 0.0)
    if noise_blk is not None:
        h = h * noise_blk
    return jnp.dot(h.astype(_BF16), w_next, preferred_element_type=_F32)


def _fc_then_mm(f_blk, b, w_next, noise_blk):
    # h = relu(f + b) [* noise]; return h @ W_next.
    h = jnp.maximum(f_blk.astype(_F32) + b, 0.0)
    if noise_blk is not None:
        h = h * noise_blk
    return jnp.dot(h.astype(_BF16), w_next, preferred_element_type=_F32)


def _log_softmax(logits):
    m = jnp.max(logits, axis=1, keepdims=True)
    shifted = logits - m
    lse = jnp.log(jnp.sum(jnp.exp(shifted), axis=1, keepdims=True))
    return shifted - lse


# ----------------------------------------------------------------------------
# Pallas kernels (each row-blocked over nodes)
# ----------------------------------------------------------------------------
def transform_kernel(x_ref, w_ref, o_ref):
    o_ref[...] = _transform(x_ref[...], w_ref[...]).astype(o_ref.dtype)


def gcn_kernel(adj_ref, t_ref, b_ref, w_ref, o_ref):
    o_ref[...] = _gcn_then_mm(adj_ref[...], t_ref[...], b_ref[...],
                              w_ref[...], None).astype(o_ref.dtype)


def gcn_noise_kernel(adj_ref, t_ref, b_ref, w_ref, n_ref, o_ref):
    o_ref[...] = _gcn_then_mm(adj_ref[...], t_ref[...], b_ref[...],
                              w_ref[...], n_ref[...]).astype(o_ref.dtype)


def fc_kernel(f_ref, b_ref, w_ref, o_ref):
    o_ref[...] = _fc_then_mm(f_ref[...], b_ref[...], w_ref[...],
                             None).astype(o_ref.dtype)


def fc_noise_kernel(f_ref, b_ref, w_ref, n_ref, o_ref):
    o_ref[...] = _fc_then_mm(f_ref[...], b_ref[...], w_ref[...],
                             n_ref[...]).astype(o_ref.dtype)


def final_kernel(f_ref, b_ref, w3_ref, b3_ref, o_ref):
    logits = _fc_then_mm(f_ref[...], b_ref[...], w3_ref[...], None) + b3_ref[...]
    o_ref[...] = _log_softmax(logits)


def final_noise_kernel(f_ref, b_ref, w3_ref, b3_ref, n_ref, o_ref):
    logits = _fc_then_mm(f_ref[...], b_ref[...], w3_ref[...],
                         n_ref[...]) + b3_ref[...]
    o_ref[...] = _log_softmax(logits)


# ----------------------------------------------------------------------------
# Per-layer pallas_call wrappers
# ----------------------------------------------------------------------------
def _cparams():
    return pltpu.CompilerParams(dimension_semantics=("parallel",))


def _row_block(tm, cols):
    return pl.BlockSpec((tm, cols), lambda i: (i, 0))


def _full_block(shape):
    return pl.BlockSpec(shape, lambda i: (0, 0))


def _transform_layer(x, w, *, tm):
    n, f = x.shape
    hp = w.shape[1]
    return pl.pallas_call(
        transform_kernel,
        out_shape=jax.ShapeDtypeStruct((n, hp), _BF16),
        grid=(n // tm,),
        in_specs=[_row_block(tm, f), _full_block(w.shape)],
        out_specs=_row_block(tm, hp),
        compiler_params=_cparams(),
    )(x, w)


def _gcn_layer(adj, t, b, w_next, noise, *, tm):
    n = adj.shape[0]
    hp = t.shape[1]
    hn = w_next.shape[1]
    in_specs = [_row_block(tm, n), _full_block(t.shape),
                _full_block(b.shape), _full_block(w_next.shape)]
    args = [adj, t, b, w_next]
    kernel = gcn_kernel
    if noise is not None:
        in_specs.append(_row_block(tm, hp))
        args.append(noise)
        kernel = gcn_noise_kernel
    return pl.pallas_call(
        kernel,
        out_shape=jax.ShapeDtypeStruct((n, hn), _BF16),
        grid=(n // tm,),
        in_specs=in_specs,
        out_specs=_row_block(tm, hn),
        compiler_params=_cparams(),
    )(*args)


def _fc_layer(f, b, w_next, noise, *, tm):
    n, hp = f.shape
    hn = w_next.shape[1]
    in_specs = [_row_block(tm, hp), _full_block(b.shape),
                _full_block(w_next.shape)]
    args = [f, b, w_next]
    kernel = fc_kernel
    if noise is not None:
        in_specs.append(_row_block(tm, hp))
        args.append(noise)
        kernel = fc_noise_kernel
    return pl.pallas_call(
        kernel,
        out_shape=jax.ShapeDtypeStruct((n, hn), _BF16),
        grid=(n // tm,),
        in_specs=in_specs,
        out_specs=_row_block(tm, hn),
        compiler_params=_cparams(),
    )(*args)


def _final_layer(f, b, w3, b3, noise, *, tm):
    n, hp = f.shape
    cp = w3.shape[1]
    in_specs = [_row_block(tm, hp), _full_block(b.shape),
                _full_block(w3.shape), _full_block(b3.shape)]
    args = [f, b, w3, b3]
    kernel = final_kernel
    if noise is not None:
        in_specs.append(_row_block(tm, hp))
        args.append(noise)
        kernel = final_noise_kernel
    return pl.pallas_call(
        kernel,
        out_shape=jax.ShapeDtypeStruct((n, cp), _F32),
        grid=(n // tm,),
        in_specs=in_specs,
        out_specs=_row_block(tm, cp),
        compiler_params=_cparams(),
    )(*args)


# ----------------------------------------------------------------------------
# Full forward pass
# ----------------------------------------------------------------------------
def _pick_row_tile(n):
    # Largest power-of-two row tile <= 256 that divides N and gives >= 2 blocks
    # (so the row grid / megacore sharding is actually exercised).
    for tm in (256, 128, 64, 32, 16, 8):
        if n % tm == 0 and n // tm >= 2:
            return tm
    return n


def net_forward(adj, x, padded_params, noises=None, *, num_classes=7):
    """noises: None (eval) or dict with keys among {'conv1','conv2','conv3'}
    (args.fc==1) / {'fc1','fc2'} (args.fc==0); each value is an (N, 128) f32
    multiplicative-noise matrix (only the first n_hidden lanes matter)."""
    (w1p, w2p, w3p, fw1p, fw2p, fw3p,
     b1p, b2p, b3p, fb1p, fb2p, fb3p) = padded_params
    n = x.shape[0]
    tm = _pick_row_tile(n)
    noises = noises or {}

    adj = adj.astype(_BF16)
    x = x.astype(_BF16)

    t = _transform_layer(x, w1p, tm=tm)                              # X @ W1
    t = _gcn_layer(adj, t, b1p, w2p, noises.get("conv1"), tm=tm)     # conv1 -> @W2
    t = _gcn_layer(adj, t, b2p, w3p, noises.get("conv2"), tm=tm)     # conv2 -> @W3
    t = _gcn_layer(adj, t, b3p, fw1p, noises.get("conv3"), tm=tm)    # conv3 -> @FW1
    t = _fc_layer(t, fb1p, fw2p, noises.get("fc1"), tm=tm)           # fc1   -> @FW2
    out = _final_layer(t, fb2p, fw3p, fb3p, noises.get("fc2"), tm=tm)  # fc2+fc3+log_softmax
    return out[:, :num_classes]


def reference_forward(adj, x, padded_params, noises=None, *, num_classes=7):
    """Pure-JAX reference using the exact same math / bf16 round-trips."""
    (w1p, w2p, w3p, fw1p, fw2p, fw3p,
     b1p, b2p, b3p, fb1p, fb2p, fb3p) = padded_params
    noises = noises or {}
    adj = adj.astype(_BF16)
    x = x.astype(_BF16)

    t = _transform(x, w1p).astype(_BF16)
    t = _gcn_then_mm(adj, t, b1p, w2p, noises.get("conv1")).astype(_BF16)
    t = _gcn_then_mm(adj, t, b2p, w3p, noises.get("conv2")).astype(_BF16)
    t = _gcn_then_mm(adj, t, b3p, fw1p, noises.get("conv3")).astype(_BF16)
    t = _fc_then_mm(t, fb1p, fw2p, noises.get("fc1")).astype(_BF16)
    logits = _fc_then_mm(t, fb2p, fw3p, noises.get("fc2")) + fb3p
    return _log_softmax(logits)[:, :num_classes]


# ----------------------------------------------------------------------------
# Glue: graph normalization, parameter init + padding, noise sampling
# ----------------------------------------------------------------------------
def build_normalized_adjacency(key, n_nodes, n_edges):
    ks, kd = jax.random.split(key)
    src = jax.random.randint(ks, (n_edges,), 0, n_nodes)
    dst = jax.random.randint(kd, (n_edges,), 0, n_nodes)
    a = jnp.zeros((n_nodes, n_nodes), _F32).at[src, dst].set(1.0)
    a = jnp.maximum(a, a.T)                      # undirected
    a = a + jnp.eye(n_nodes, dtype=_F32)         # add self loops
    deg = jnp.sum(a, axis=1)
    d_inv_sqrt = 1.0 / jnp.sqrt(deg)
    return d_inv_sqrt[:, None] * a * d_inv_sqrt[None, :]


def init_params(key, n_features, n_hidden, n_classes):
    def lin(k, fan_in, fan_out):
        kw, kb = jax.random.split(k)
        lim = 1.0 / jnp.sqrt(jnp.float32(fan_in))
        w = jax.random.uniform(kw, (fan_in, fan_out), _F32, -lim, lim)
        b = jax.random.uniform(kb, (1, fan_out), _F32, -lim, lim)
        return w, b

    keys = jax.random.split(key, 6)
    w1, b1 = lin(keys[0], n_features, n_hidden)   # conv1
    w2, b2 = lin(keys[1], n_hidden, n_hidden)     # conv2
    w3, b3 = lin(keys[2], n_hidden, n_hidden)     # conv3
    fw1, fb1 = lin(keys[3], n_hidden, n_hidden)   # fc1
    fw2, fb2 = lin(keys[4], n_hidden, n_hidden)   # fc2
    fw3, fb3 = lin(keys[5], n_hidden, n_classes)  # fc3
    return (w1, b1, w2, b2, w3, b3, fw1, fb1, fw2, fb2, fw3, fb3)


def pad_params(params):
    """Zero-pad hidden dim to 128 lanes; pad fc3 classes to 128 with -1e30 bias
    so padded class lanes never win the softmax (they are sliced off anyway)."""
    (w1, b1, w2, b2, w3, b3, fw1, fb1, fw2, fb2, fw3, fb3) = params

    def pad_w(w, rows, cols):
        out = jnp.zeros((rows, cols), _F32)
        return out.at[:w.shape[0], :w.shape[1]].set(w).astype(_BF16)

    def pad_b(b):
        return jnp.zeros((1, _HP), _F32).at[:, :b.shape[1]].set(b)

    f = w1.shape[0]
    w1p = pad_w(w1, f, _HP)
    w2p = pad_w(w2, _HP, _HP)
    w3p = pad_w(w3, _HP, _HP)
    fw1p = pad_w(fw1, _HP, _HP)
    fw2p = pad_w(fw2, _HP, _HP)
    fw3p = pad_w(fw3, _HP, _CP)
    b1p, b2p, b3p, fb1p, fb2p = map(pad_b, (b1, b2, b3, fb1, fb2))
    fb3p = jnp.full((1, _CP), _NEG, _F32).at[:, :fb3.shape[1]].set(fb3)
    return (w1p, w2p, w3p, fw1p, fw2p, fw3p,
            b1p, b2p, b3p, fb1p, fb2p, fb3p)


def make_noises(key, n_nodes, n_hidden, train, fc_mode=1, gaus_mean=1.0):
    """|N(GauMean, 1)| multiplicative noise for exactly the layers that use it.
    fc_mode==1 -> after conv1/2/3; fc_mode==0 -> after fc1/fc2.  Lanes beyond
    n_hidden are ones (they multiply exact zeros anyway)."""
    if not train:
        return None

    def sample(k):
        raw = jnp.abs(gaus_mean +
                      jax.random.normal(k, (n_nodes, n_hidden), _F32))
        return jnp.ones((n_nodes, _HP), _F32).at[:, :n_hidden].set(raw)

    if fc_mode == 1:
        ks = jax.random.split(key, 3)
        return {"conv1": sample(ks[0]), "conv2": sample(ks[1]),
                "conv3": sample(ks[2])}
    ks = jax.random.split(key, 2)
    return {"fc1": sample(ks[0]), "fc2": sample(ks[1])}


# ----------------------------------------------------------------------------
if __name__ == "__main__":
    # Small synthetic "Cora-like" problem.
    N_NODES = 128
    N_EDGES = 512
    N_FEATURES = 64
    N_HIDDEN = 32
    N_CLASSES = 7

    root = jax.random.PRNGKey(0)
    k_adj, k_x, k_par, k_noise = jax.random.split(root, 4)

    adj_norm = build_normalized_adjacency(k_adj, N_NODES, N_EDGES)
    x = jax.random.normal(k_x, (N_NODES, N_FEATURES), jnp.float32)
    params = init_params(k_par, N_FEATURES, N_HIDDEN, N_CLASSES)
    padded = pad_params(params)

    fwd = jax.jit(functools.partial(net_forward, num_classes=N_CLASSES))

    # Eval path (TRAIN == False): no noise inputs anywhere.
    out_eval = jax.block_until_ready(fwd(adj_norm, x, padded, None))

    # Train path (TRAIN == True, args.fc == 1, args.Gaus == 1): only the three
    # real noise matrices are built / DMA'd (no multiply-by-ones passes).
    noises = make_noises(k_noise, N_NODES, N_HIDDEN, train=True,
                         fc_mode=1, gaus_mean=1.0)
    out_train = jax.block_until_ready(fwd(adj_norm, x, padded, noises))

    # Sanity checks.
    assert out_eval.shape == (N_NODES, N_CLASSES)
    assert out_train.shape == (N_NODES, N_CLASSES)
    row_sums = jnp.sum(jnp.exp(out_eval), axis=1)
    assert bool(jnp.all(jnp.abs(row_sums - 1.0) < 1e-3))

    # Pure-JAX references with identical math / bf16 casts.
    ref_eval = reference_forward(adj_norm, x, padded, None,
                                 num_classes=N_CLASSES)
    ref_train = reference_forward(adj_norm, x, padded, noises,
                                  num_classes=N_CLASSES)
    assert bool(jnp.max(jnp.abs(out_eval - ref_eval)) < 5e-2)
    assert bool(jnp.max(jnp.abs(out_train - ref_train)) < 5e-2)

    print("KERNEL_OK")
</pallas_src>

<mosaic_0001>
module attributes {stable_mosaic.version = 11 : i64} {
  func.func @transform_kernel(%arg0: i32, %arg1: memref<64x64xbf16, #tpu.memory_space<vmem>>, %arg2: memref<64x128xbf16, #tpu.memory_space<vmem>>, %arg3: memref<64x128xbf16, #tpu.memory_space<vmem>>) attributes {dimension_semantics = [#tpu.dimension_semantics<parallel>], iteration_bounds = array<i64: 2>, scalar_prefetch = 0 : i64, scratch_operands = 0 : i64, tpu.core_type = #tpu.core_type<tc>, window_params = [{transform_indices = @transform_0, window_bounds = array<i64: 64, 64>}, {pipeline_mode = #tpu.pipeline_mode<synchronous>, transform_indices = @transform_1, window_bounds = array<i64: 64, 128>}, {transform_indices = @transform_2, window_bounds = array<i64: 64, 128>}]} {
    %c0 = arith.constant 0 : index
    %c0_0 = arith.constant 0 : index
    %0 = vector.load %arg1[%c0, %c0_0] : memref<64x64xbf16, #tpu.memory_space<vmem>>, vector<64x64xbf16>
    %c0_1 = arith.constant 0 : index
    %c0_2 = arith.constant 0 : index
    %1 = vector.load %arg2[%c0_1, %c0_2] : memref<64x128xbf16, #tpu.memory_space<vmem>>, vector<64x128xbf16>
    %cst = arith.constant dense<0.000000e+00> : vector<64x128xf32>
    %2 = tpu.matmul %0, %1, %cst {dimension_numbers = #tpu.dot_dimension_numbers<[1], [0], [0], [1], [0, 0, 1, 1], [], []>} : vector<64x64xbf16>, vector<64x128xbf16>, vector<64x128xf32> -> vector<64x128xf32>
    %3 = arith.truncf %2 : vector<64x128xf32> to vector<64x128xbf16>
    %c0_3 = arith.constant 0 : index
    %c0_4 = arith.constant 0 : index
    %4 = vector.load %arg3[%c0_3, %c0_4] : memref<64x128xbf16, #tpu.memory_space<vmem>>, vector<64x128xbf16>
    tpu.vector_store %arg3[%c0_3, %c0_4], %3 {strides = array<i32>} : memref<64x128xbf16, #tpu.memory_space<vmem>>, vector<64x128xbf16>,
    return
  }
  func.func @transform_0(%arg0: i32) -> (i32, i32) {
    %c0_i32 = arith.constant 0 : i32
    %c0_i32_0 = arith.constant 0 : i32
    return %arg0, %c0_i32 : i32, i32
  }
  func.func @transform_1(%arg0: i32) -> (i32, i32) {
    %c0_i32 = arith.constant 0 : i32
    %c0_i32_0 = arith.constant 0 : i32
    %c0_i32_1 = arith.constant 0 : i32
    return %c0_i32, %c0_i32_0 : i32, i32
  }
  func.func @transform_2(%arg0: i32) -> (i32, i32) {
    %c0_i32 = arith.constant 0 : i32
    %c0_i32_0 = arith.constant 0 : i32
    return %arg0, %c0_i32 : i32, i32
  }
}

module attributes {stable_mosaic.version = 11 : i64} {
  func.func @gcn_kernel(%arg0: i32, %arg1: memref<64x128xbf16, #tpu.memory_space<vmem>>, %arg2: memref<128x128xbf16, #tpu.memory_space<vmem>>, %arg3: memref<1x128xf32, #tpu.memory_space<vmem>>, %arg4: memref<128x128xbf16, #tpu.memory_space<vmem>>, %arg5: memref<64x128xbf16, #tpu.memory_space<vmem>>) attributes {dimension_semantics = [#tpu.dimension_semantics<parallel>], iteration_bounds = array<i64: 2>, scalar_prefetch = 0 : i64, scratch_operands = 0 : i64, tpu.core_type = #tpu.core_type<tc>, window_params = [{transform_indices = @transform_0, window_bounds = array<i64: 64, 128>}, {pipeline_mode = #tpu.pipeline_mode<synchronous>, transform_indices = @transform_1, window_bounds = array<i64: 128, 128>}, {pipeline_mode = #tpu.pipeline_mode<synchronous>, transform_indices = @transform_2, window_bounds = array<i64: 1, 128>}, {pipeline_mode = #tpu.pipeline_mode<synchronous>, transform_indices = @transform_3, window_bounds = array<i64: 128, 128>}, {transform_indices = @transform_4, window_bounds = array<i64: 64, 128>}]} {
    %c0 = arith.constant 0 : index
    %c0_0 = arith.constant 0 : index
    %0 = vector.load %arg1[%c0, %c0_0] : memref<64x128xbf16, #tpu.memory_space<vmem>>, vector<64x128xbf16>
    %c0_1 = arith.constant 0 : index
    %c0_2 = arith.constant 0 : index
    %1 = vector.load %arg2[%c0_1, %c0_2] : memref<128x128xbf16, #tpu.memory_space<vmem>>, vector<128x128xbf16>
    %c0_3 = arith.constant 0 : index
    %c0_4 = arith.constant 0 : index
    %2 = vector.load %arg3[%c0_3, %c0_4] : memref<1x128xf32, #tpu.memory_space<vmem>>, vector<1x128xf32>
    %c0_5 = arith.constant 0 : index
    %c0_6 = arith.constant 0 : index
    %3 = vector.load %arg4[%c0_5, %c0_6] : memref<128x128xbf16, #tpu.memory_space<vmem>>, vector<128x128xbf16>
    %cst = arith.constant dense<0.000000e+00> : vector<64x128xf32>
    %4 = tpu.matmul %0, %1, %cst {dimension_numbers = #tpu.dot_dimension_numbers<[1], [0], [0], [1], [0, 0, 1, 1], [], []>} : vector<64x128xbf16>, vector<128x128xbf16>, vector<64x128xf32> -> vector<64x128xf32>
    %5 = vector.broadcast %2 : vector<1x128xf32> to vector<64x128xf32>
    %6 = arith.addf %4, %5 : vector<64x128xf32>
    %cst_7 = arith.constant 0.000000e+00 : f32
    %7 = vector.broadcast %cst_7 : f32 to vector<64x128xf32>
    %8 = arith.maximumf %6, %7 : vector<64x128xf32>
    %9 = arith.truncf %8 : vector<64x128xf32> to vector<64x128xbf16>
    %cst_8 = arith.constant dense<0.000000e+00> : vector<64x128xf32>
    %10 = tpu.matmul %9, %3, %cst_8 {dimension_numbers = #tpu.dot_dimension_numbers<[1], [0], [0], [1], [0, 0, 1, 1], [], []>} : vector<64x128xbf16>, vector<128x128xbf16>, vector<64x128xf32> -> vector<64x128xf32>
    %11 = arith.truncf %10 : vector<64x128xf32> to vector<64x128xbf16>
    %c0_9 = arith.constant 0 : index
    %c0_10 = arith.constant 0 : index
    %12 = vector.load %arg5[%c0_9, %c0_10] : memref<64x128xbf16, #tpu.memory_space<vmem>>, vector<64x128xbf16>
    tpu.vector_store %arg5[%c0_9, %c0_10], %11 {strides = array<i32>} : memref<64x128xbf16, #tpu.memory_space<vmem>>, vector<64x128xbf16>,
    return
  }
  func.func @transform_0(%arg0: i32) -> (i32, i32) {
    %c0_i32 = arith.constant 0 : i32
    %c0_i32_0 = arith.constant 0 : i32
    return %arg0, %c0_i32 : i32, i32
  }
  func.func @transform_1(%arg0: i32) -> (i32, i32) {
    %c0_i32 = arith.constant 0 : i32
    %c0_i32_0 = arith.constant 0 : i32
    %c0_i32_1 = arith.constant 0 : i32
    return %c0_i32, %c0_i32_0 : i32, i32
  }
  func.func @transform_2(%arg0: i32) -> (i32, i32) {
    %c0_i32 = arith.constant 0 : i32
    %c0_i32_0 = arith.constant 0 : i32
    %c0_i32_1 = arith.constant 0 : i32
    return %c0_i32, %c0_i32_0 : i32, i32
  }
  func.func @transform_3(%arg0: i32) -> (i32, i32) {
    %c0_i32 = arith.constant 0 : i32
    %c0_i32_0 = arith.constant 0 : i32
    %c0_i32_1 = arith.constant 0 : i32
    return %c0_i32, %c0_i32_0 : i32, i32
  }
  func.func @transform_4(%arg0: i32) -> (i32, i32) {
    %c0_i32 = arith.constant 0 : i32
    %c0_i32_0 = arith.constant 0 : i32
    return %arg0, %c0_i32 : i32, i32
  }
}

module attributes {stable_mosaic.version = 11 : i64} {
  func.func @fc_kernel(%arg0: i32, %arg1: memref<64x128xbf16, #tpu.memory_space<vmem>>, %arg2: memref<1x128xf32, #tpu.memory_space<vmem>>, %arg3: memref<128x128xbf16, #tpu.memory_space<vmem>>, %arg4: memref<64x128xbf16, #tpu.memory_space<vmem>>) attributes {dimension_semantics = [#tpu.dimension_semantics<parallel>], iteration_bounds = array<i64: 2>, scalar_prefetch = 0 : i64, scratch_operands = 0 : i64, tpu.core_type = #tpu.core_type<tc>, window_params = [{transform_indices = @transform_0, window_bounds = array<i64: 64, 128>}, {pipeline_mode = #tpu.pipeline_mode<synchronous>, transform_indices = @transform_1, window_bounds = array<i64: 1, 128>}, {pipeline_mode = #tpu.pipeline_mode<synchronous>, transform_indices = @transform_2, window_bounds = array<i64: 128, 128>}, {transform_indices = @transform_3, window_bounds = array<i64: 64, 128>}]} {
    %c0 = arith.constant 0 : index
    %c0_0 = arith.constant 0 : index
    %0 = vector.load %arg1[%c0, %c0_0] : memref<64x128xbf16, #tpu.memory_space<vmem>>, vector<64x128xbf16>
    %c0_1 = arith.constant 0 : index
    %c0_2 = arith.constant 0 : index
    %1 = vector.load %arg2[%c0_1, %c0_2] : memref<1x128xf32, #tpu.memory_space<vmem>>, vector<1x128xf32>
    %c0_3 = arith.constant 0 : index
    %c0_4 = arith.constant 0 : index
    %2 = vector.load %arg3[%c0_3, %c0_4] : memref<128x128xbf16, #tpu.memory_space<vmem>>, vector<128x128xbf16>
    %3 = arith.extf %0 : vector<64x128xbf16> to vector<64x128xf32>
    %4 = vector.broadcast %1 : vector<1x128xf32> to vector<64x128xf32>
    %5 = arith.addf %3, %4 : vector<64x128xf32>
    %cst = arith.constant 0.000000e+00 : f32
    %6 = vector.broadcast %cst : f32 to vector<64x128xf32>
    %7 = arith.maximumf %5, %6 : vector<64x128xf32>
    %8 = arith.truncf %7 : vector<64x128xf32> to vector<64x128xbf16>
    %cst_5 = arith.constant dense<0.000000e+00> : vector<64x128xf32>
    %9 = tpu.matmul %8, %2, %cst_5 {dimension_numbers = #tpu.dot_dimension_numbers<[1], [0], [0], [1], [0, 0, 1, 1], [], []>} : vector<64x128xbf16>, vector<128x128xbf16>, vector<64x128xf32> -> vector<64x128xf32>
    %10 = arith.truncf %9 : vector<64x128xf32> to vector<64x128xbf16>
    %c0_6 = arith.constant 0 : index
    %c0_7 = arith.constant 0 : index
    %11 = vector.load %arg4[%c0_6, %c0_7] : memref<64x128xbf16, #tpu.memory_space<vmem>>, vector<64x128xbf16>
    tpu.vector_store %arg4[%c0_6, %c0_7], %10 {strides = array<i32>} : memref<64x128xbf16, #tpu.memory_space<vmem>>, vector<64x128xbf16>,
    return
  }
  func.func @transform_0(%arg0: i32) -> (i32, i32) {
    %c0_i32 = arith.constant 0 : i32
    %c0_i32_0 = arith.constant 0 : i32
    return %arg0, %c0_i32 : i32, i32
  }
  func.func @transform_1(%arg0: i32) -> (i32, i32) {
    %c0_i32 = arith.constant 0 : i32
    %c0_i32_0 = arith.constant 0 : i32
    %c0_i32_1 = arith.constant 0 : i32
    return %c0_i32, %c0_i32_0 : i32, i32
  }
  func.func @transform_2(%arg0: i32) -> (i32, i32) {
    %c0_i32 = arith.constant 0 : i32
    %c0_i32_0 = arith.constant 0 : i32
    %c0_i32_1 = arith.constant 0 : i32
    return %c0_i32, %c0_i32_0 : i32, i32
  }
  func.func @transform_3(%arg0: i32) -> (i32, i32) {
    %c0_i32 = arith.constant 0 : i32
    %c0_i32_0 = arith.constant 0 : i32
    return %arg0, %c0_i32 : i32, i32
  }
}

module attributes {stable_mosaic.version = 11 : i64} {
  func.func @final_kernel(%arg0: i32, %arg1: memref<64x128xbf16, #tpu.memory_space<vmem>>, %arg2: memref<1x128xf32, #tpu.memory_space<vmem>>, %arg3: memref<128x128xbf16, #tpu.memory_space<vmem>>, %arg4: memref<1x128xf32, #tpu.memory_space<vmem>>, %arg5: memref<64x128xf32, #tpu.memory_space<vmem>>) attributes {dimension_semantics = [#tpu.dimension_semantics<parallel>], iteration_bounds = array<i64: 2>, scalar_prefetch = 0 : i64, scratch_operands = 0 : i64, tpu.core_type = #tpu.core_type<tc>, window_params = [{transform_indices = @transform_0, window_bounds = array<i64: 64, 128>}, {pipeline_mode = #tpu.pipeline_mode<synchronous>, transform_indices = @transform_1, window_bounds = array<i64: 1, 128>}, {pipeline_mode = #tpu.pipeline_mode<synchronous>, transform_indices = @transform_2, window_bounds = array<i64: 128, 128>}, {pipeline_mode = #tpu.pipeline_mode<synchronous>, transform_indices = @transform_3, window_bounds = array<i64: 1, 128>}, {transform_indices = @transform_4, window_bounds = array<i64: 64, 128>}]} {
    %c0 = arith.constant 0 : index
    %c0_0 = arith.constant 0 : index
    %0 = vector.load %arg1[%c0, %c0_0] : memref<64x128xbf16, #tpu.memory_space<vmem>>, vector<64x128xbf16>
    %c0_1 = arith.constant 0 : index
    %c0_2 = arith.constant 0 : index
    %1 = vector.load %arg2[%c0_1, %c0_2] : memref<1x128xf32, #tpu.memory_space<vmem>>, vector<1x128xf32>
    %c0_3 = arith.constant 0 : index
    %c0_4 = arith.constant 0 : index
    %2 = vector.load %arg3[%c0_3, %c0_4] : memref<128x128xbf16, #tpu.memory_space<vmem>>, vector<128x128xbf16>
    %3 = arith.extf %0 : vector<64x128xbf16> to vector<64x128xf32>
    %4 = vector.broadcast %1 : vector<1x128xf32> to vector<64x128xf32>
    %5 = arith.addf %3, %4 : vector<64x128xf32>
    %cst = arith.constant 0.000000e+00 : f32
    %6 = vector.broadcast %cst : f32 to vector<64x128xf32>
    %7 = arith.maximumf %5, %6 : vector<64x128xf32>
    %8 = arith.truncf %7 : vector<64x128xf32> to vector<64x128xbf16>
    %cst_5 = arith.constant dense<0.000000e+00> : vector<64x128xf32>
    %9 = tpu.matmul %8, %2, %cst_5 {dimension_numbers = #tpu.dot_dimension_numbers<[1], [0], [0], [1], [0, 0, 1, 1], [], []>} : vector<64x128xbf16>, vector<128x128xbf16>, vector<64x128xf32> -> vector<64x128xf32>
    %c0_6 = arith.constant 0 : index
    %c0_7 = arith.constant 0 : index
    %10 = vector.load %arg4[%c0_6, %c0_7] : memref<1x128xf32, #tpu.memory_space<vmem>>, vector<1x128xf32>
    %11 = vector.broadcast %10 : vector<1x128xf32> to vector<64x128xf32>
    %12 = arith.addf %9, %11 : vector<64x128xf32>
    %cst_8 = arith.constant dense<0xFF800000> : vector<64xf32>
    %13 = vector.multi_reduction <maximumf>, %12, %cst_8 [1] : vector<64x128xf32> to vector<64xf32>
    %14 = vector.shape_cast %13 : vector<64xf32> to vector<64x1xf32>
    %15 = vector.broadcast %14 : vector<64x1xf32> to vector<64x128xf32>
    %16 = arith.subf %12, %15 : vector<64x128xf32>
    %17 = math.exp %16 : vector<64x128xf32>
    %cst_9 = arith.constant dense<0.000000e+00> : vector<64xf32>
    %18 = vector.multi_reduction <add>, %17, %cst_9 [1] : vector<64x128xf32> to vector<64xf32>
    %19 = vector.shape_cast %18 : vector<64xf32> to vector<64x1xf32>
    %20 = math.log %19 : vector<64x1xf32>
    %21 = vector.broadcast %20 : vector<64x1xf32> to vector<64x128xf32>
    %22 = arith.subf %16, %21 : vector<64x128xf32>
    %c0_10 = arith.constant 0 : index
    %c0_11 = arith.constant 0 : index
    %23 = vector.load %arg5[%c0_10, %c0_11] : memref<64x128xf32, #tpu.memory_space<vmem>>, vector<64x128xf32>
    tpu.vector_store %arg5[%c0_10, %c0_11], %22 {strides = array<i32>} : memref<64x128xf32, #tpu.memory_space<vmem>>, vector<64x128xf32>,
    return
  }
  func.func @transform_0(%arg0: i32) -> (i32, i32) {
    %c0_i32 = arith.constant 0 : i32
    %c0_i32_0 = arith.constant 0 : i32
    return %arg0, %c0_i32 : i32, i32
  }
  func.func @transform_1(%arg0: i32) -> (i32, i32) {
    %c0_i32 = arith.constant 0 : i32
    %c0_i32_0 = arith.constant 0 : i32
    %c0_i32_1 = arith.constant 0 : i32
    return %c0_i32, %c0_i32_0 : i32, i32
  }
  func.func @transform_2(%arg0: i32) -> (i32, i32) {
    %c0_i32 = arith.constant 0 : i32
    %c0_i32_0 = arith.constant 0 : i32
    %c0_i32_1 = arith.constant 0 : i32
    return %c0_i32, %c0_i32_0 : i32, i32
  }
  func.func @transform_3(%arg0: i32) -> (i32, i32) {
    %c0_i32 = arith.constant 0 : i32
    %c0_i32_0 = arith.constant 0 : i32
    %c0_i32_1 = arith.constant 0 : i32
    return %c0_i32, %c0_i32_0 : i32, i32
  }
  func.func @transform_4(%arg0: i32) -> (i32, i32) {
    %c0_i32 = arith.constant 0 : i32
    %c0_i32_0 = arith.constant 0 : i32
    return %arg0, %c0_i32 : i32, i32
  }
}

</mosaic_0001>

<llo_original>
// kernel: net_forward.6
$region0: #{net_forward.6}
  #allocation0 [shape = 'u32[]', space=smem, size = 0x4, offset = 0x4, fixed_abs, tag = 'smem constant byte address 0x4 - core index']
  #allocation1 [shape = 'u32[144,128]{1,0:T(1,128)}', space=vmem, size = 0x12000, scoped, tag = 'internal scratch']
  %s0 = inlined_call_operand.vmem [shape: bf16[128,64], index: 0, kind: input, shape index: {}]
  %s1 = inlined_call_operand.vmem [shape: bf16[64,128], index: 1, kind: input, shape index: {}]
  %s2 = inlined_call_operand.vmem [shape: bf16[128,128], index: 2, kind: output, shape index: {}]
  %s3 = sld [smem:[#allocation0]]
  $region41: #{net_forward.6} parent=0
    _
  %s5 = ssub.s32 1, %s3
  %s6 = scalar_select 0, %s5, %s3
  loop: start=0, step=1, limit=4
  $region2: #{net_forward.6} parent=0 // loop_pre_header
    _
  $region3: #{net_forward.6} parent=0 // loop_header
    %s8 = sphi 0, %s12
    %p9 = scmp.ge.s32.totalorder %s8, 4
    %s18 = sphi 0, %s20
    %s21 = sphi 0, %s18
    %s22 = sphi 0, %s21
    %s38 = sphi 0, %s22
    %s42 = sphi 0, %s42
    %s44 = sphi 0, %s42
    %s45 = sphi 0, %s44
    %s59 = sphi 0, %s45
    %s65 = sphi 0, %s67
    %s68 = sphi 0, %s65
    %s69 = sphi 0, %s68
    %s85 = sphi 0, %s69
  $region4: #{net_forward.6} parent=0 // loop_header_branch
    %11 = sbr.rel (%p9) target = $region8
  $region5: #{net_forward.6} parent=0 // loop_body
    %s13 = ssub.s32 %s8, 1
    %s14 = ssub.s32 %s8, 2
    %s15 = sadd.s32 %s8, 1
    %s16 = ssub.s32 %s8, %s15
    %p17 = scmp.eq.s32.totalorder %s16, 0
    %s19 = sadd.s32 %s18, 1
    %s20 = scalar_select %p17, %s18, %s19
    %p23 = pneg %p17
    %p24 = scmp.eq.s32.totalorder %s8, 1
    %p25 = por %p23, %p24
    %p26 = scmp.ne.s32.totalorder %s18, %s21
    %p27 = scmp.eq.s32.totalorder %s8, 0
    %p28 = por %p26, %p27
    %p29 = scmp.ne.s32.totalorder %s18, %s21
    %p30 = scmp.eq.s32.totalorder %s13, 1
    %p31 = por %p29, %p30
    %p32 = scmp.ne.s32.totalorder %s21, %s22
    %p33 = scmp.eq.s32.totalorder %s13, 0
    %p34 = por %p32, %p33
    %p35 = scmp.ne.s32.totalorder %s21, %s22
    %p36 = scmp.eq.s32.totalorder %s14, 1
    %p37 = por %p35, %p36
    %p39 = scmp.ne.s32.totalorder %s22, %s38
    %p40 = scmp.eq.s32.totalorder %s14, 0
    %p41 = por %p39, %p40
    %s43 = sadd.s32 %s42, 1
    %p46 = scmp.eq.s32.totalorder %s8, 1
    %p47 = scmp.ne.s32.totalorder %s42, %s44
    %p48 = scmp.eq.s32.totalorder %s8, 0
    %p49 = por %p47, %p48
    %p50 = scmp.ne.s32.totalorder %s42, %s44
    %p51 = scmp.eq.s32.totalorder %s13, 1
    %p52 = por %p50, %p51
    %p53 = scmp.ne.s32.totalorder %s44, %s45
    %p54 = scmp.eq.s32.totalorder %s13, 0
    %p55 = por %p53, %p54
    %p56 = scmp.ne.s32.totalorder %s44, %s45
    %p57 = scmp.eq.s32.totalorder %s14, 1
    %p58 = por %p56, %p57
    %p60 = scmp.ne.s32.totalorder %s45, %s59
    %p61 = scmp.eq.s32.totalorder %s14, 0
    %p62 = por %p60, %p61
    %s63 = ssub.s32 %s8, %s15
    %p64 = scmp.eq.s32.totalorder %s63, 0
    %s66 = sadd.s32 %s65, 1
    %s67 = scalar_select %p64, %s65, %s66
    %p70 = pneg %p64
    %p71 = scmp.eq.s32.totalorder %s8, 1
    %p72 = por %p70, %p71
    %p73 = scmp.ne.s32.totalorder %s65, %s68
    %p74 = scmp.eq.s32.totalorder %s8, 0
    %p75 = por %p73, %p74
    %p76 = scmp.ne.s32.totalorder %s65, %s68
    %p77 = scmp.eq.s32.totalorder %s13, 1
    %p78 = por %p76, %p77
    %p79 = scmp.ne.s32.totalorder %s68, %s69
    %p80 = scmp.eq.s32.totalorder %s13, 0
    %p81 = por %p79, %p80
    %p82 = scmp.ne.s32.totalorder %s68, %s69
    %p83 = scmp.eq.s32.totalorder %s14, 1
    %p84 = por %p82, %p83
    %p86 = scmp.ne.s32.totalorder %s69, %s85
    %p87 = scmp.eq.s32.totalorder %s14, 0
    %p88 = por %p86, %p87
    %p89 = scmp.le.s32.totalorder 1, %s8
    %p90 = scmp.lt.s32.totalorder %s8, 3
    %p91 = pnand %p89, %p90
    %p92 = pneg %p91
    // Predicated region
    $region9: #{net_forward.6} parent=5 // pred_check
      _
    $region10: #{net_forward.6} parent=5 // pred_check_branch
      %94 = sbr.rel (%p91) target = $region12
    $region11: #{net_forward.6} parent=5 // pred_region
      %s95 = ssub.s32 %s8, 1
      // Predicated region
      $region13: #{net_forward.6} parent=11 // pred_check
        %p96 = pneg %p55
      $region14: #{net_forward.6} parent=11 // pred_check_branch
        %98 = sbr.rel (%p96) target = $region16
      $region15: #{net_forward.6} parent=11 // pred_region
        _
      $region16: #{net_forward.6} parent=11 // pred_fallthru
        _
    $region12: #{net_forward.6} parent=5 // pred_fallthru
      _
    %p99 = scmp.lt.s32.totalorder %s8, 2
    // Predicated region
    $region17: #{net_forward.6} parent=5 // pred_check
      %p100 = pneg %p99
    $region18: #{net_forward.6} parent=5 // pred_check_branch
      %102 = sbr.rel (%p100) target = $region20
    $region19: #{net_forward.6} parent=5 // pred_region
      // Predicated region
      $region21: #{net_forward.6} parent=19 // pred_check
        %p103 = pneg %p28
      $region22: #{net_forward.6} parent=19 // pred_check_branch
        %105 = sbr.rel (%p103) target = $region24
      $region23: #{net_forward.6} parent=19 // pred_region
        %s106 = smul.u32 8, %s8
        %p107 = scmp.lt.s32.totalorder %s106, 15
        %s108 = scalar_select %p107, %s106, 15
        %s109 = smul.addr %s108, 4
        %s110 = scalar_lea.vmem %s0, %s109
        %s111 = smul.u32 8, %s8
      $region24: #{net_forward.6} parent=19 // pred_fallthru
        _
    $region20: #{net_forward.6} parent=5 // pred_fallthru
      _
    %p112 = scmp.le.s32.totalorder 1, %s8
    %p113 = scmp.lt.s32.totalorder %s8, 3
    %p114 = pnand %p112, %p113
    %p115 = pneg %p114
    // Predicated region
    $region25: #{net_forward.6} parent=5 // pred_check
      _
    $region26: #{net_forward.6} parent=5 // pred_check_branch
      %117 = sbr.rel (%p114) target = $region28
    $region27: #{net_forward.6} parent=5 // pred_region
      %s118 = ssub.s32 %s8, 1
      %s119 = smul.u32 8, %s13
      %p120 = scmp.lt.s32.totalorder %s119, 15
      %s121 = scalar_select %p120, %s119, 15
      %s122 = smul.addr %s121, 4
      %s123 = scalar_lea.vmem %s0, %s122
      %p124 = pneg %p34
      %p125 = pneg %p31
      %p126 = pneg %p55
      %p127 = pneg %p52
      %p128 = pneg %p81
      %p129 = pneg %p78
      %s130 = smul.u32 8, %s13
      %p131 = scmp.lt.s32.totalorder %s130, 15
      %s132 = scalar_select %p131, %s130, 15
      %s133 = smul.addr %s132, 4
      %s134 = scalar_lea.vmem %s2, %s133
      %s135 = smul.u32 8, %s13
      %p136 = scmp.lt.s32.totalorder %s135, 15
      %s137 = scalar_select %p136, %s135, 15
      %s138 = smul.addr %s137, 4
      %s139 = scalar_lea.vmem %s0, %s138
      %s140 = smul.u32 8, %s13
      %s141 = smul.u32 8, %s13
      %p142 = scmp.lt.s32.totalorder %s141, 15
      %s143 = scalar_select %p142, %s141, 15
      %s144 = smul.addr %s143, 4
      %s145 = scalar_lea.vmem %s2, %s144
      %s146 = smul.u32 8, %s13
      %v148 = vld [vmem:[%s139] sm:$0xf]
      %v149 = vld [vmem:[%s139 + $0x4] sm:$0xf]
      %v150 = vld [vmem:[%s139 + $0x8] sm:$0xf]
      %v151 = vld [vmem:[%s139 + $0xc] sm:$0xf]
      %v152 = vld [vmem:[%s139 + $0x10] sm:$0xf]
      %v153 = vld [vmem:[%s139 + $0x14] sm:$0xf]
      %v154 = vld [vmem:[%s139 + $0x18] sm:$0xf]
      %v155 = vld [vmem:[%s139 + $0x1c] sm:$0xf]
      %v156 = vld [vmem:[%s1] sm:$0xf]
      %v157 = vld [vmem:[%s1 + $0x4] sm:$0xf]
      %v158 = vld [vmem:[%s1 + $0x8] sm:$0xf]
      %v159 = vld [vmem:[%s1 + $0xc] sm:$0xf]
      %v160 = vld [vmem:[%s1 + $0x10] sm:$0xf]
      %v161 = vld [vmem:[%s1 + $0x14] sm:$0xf]
      %v162 = vld [vmem:[%s1 + $0x18] sm:$0xf]
      %v163 = vld [vmem:[%s1 + $0x1c] sm:$0xf]
      %v172 = vunpack.c.l.b16 %v148
      %v173 = vunpack.c.l.b16 %v149
      %v174 = vunpack.c.l.b16 %v150
      %v175 = vunpack.c.l.b16 %v151
      %v176 = vunpack.c.l.b16 %v152
      %v177 = vunpack.c.l.b16 %v153
      %v178 = vunpack.c.l.b16 %v154
      %v179 = vunpack.c.l.b16 %v155
      %v180 = vpack.c.b16 %v173, %v172
      %v181 = vpack.c.b16 %v175, %v174
      %v182 = vpack.c.b16 %v177, %v176
      %v183 = vpack.c.b16 %v179, %v178
      %v192 = vunpack.c.l.b16 %v156
      %v193 = vunpack.c.l.b16 %v157
      %v194 = vunpack.c.l.b16 %v158
      %v195 = vunpack.c.l.b16 %v159
      %v196 = vunpack.c.l.b16 %v160
      %v197 = vunpack.c.l.b16 %v161
      %v198 = vunpack.c.l.b16 %v162
      %v199 = vunpack.c.l.b16 %v163
      %v200 = vpack.c.b16 %v193, %v192
      %v201 = vpack.c.b16 %v195, %v194
      %v202 = vpack.c.b16 %v197, %v196
      %v203 = vpack.c.b16 %v199, %v198
      %vm208 = vcmask 523264
      %v210 = vsel %vm208, %v180, 0
      %v213 = vsel %vm208, %v181, 0
      %v216 = vsel %vm208, %v182, 0
      %v219 = vsel %vm208, %v183, 0
      %221 = vmatprep.subr.bf16.mxu0 0
      %222 = vmatpush1.bf16.msra.mxu0 %v200
      %223 = vmatprep.subr.bf16.mxu0 0
      %224 = vmatpush1.bf16.msra.mxu0 %v201
      %225 = vmatprep.subr.bf16.mxu0 0
      %226 = vmatpush1.bf16.msra.mxu0 %v202
      %227 = vmatprep.subr.bf16.mxu0 0
      %228 = vmatpush1.bf16.msra.mxu0 %v203
      %229 = vmatprep.subr.bf16.mxu0 0
      %230 = vmatpush1.bf16.msra.mxu0 0
      %231 = vmatprep.subr.bf16.mxu0 0
      %232 = vmatpush1.bf16.msra.mxu0 0
      %233 = vmatprep.subr.bf16.mxu0 0
      %234 = vmatpush1.bf16.msra.mxu0 0
      %235 = vmatprep.subr.bf16.mxu0 0
      %236 = vmatpush1.bf16.msra.mxu0 0
      %237 = vmatprep.subr.bf16.mxu0 0
      %238 = vmatpush1.bf16.msra.mxu0 0
      %239 = vmatprep.subr.bf16.mxu0 0
      %240 = vmatpush1.bf16.msra.mxu0 0
      %241 = vmatprep.subr.bf16.mxu0 0
      %242 = vmatpush1.bf16.msra.mxu0 0
      %243 = vmatprep.subr.bf16.mxu0 0
      %244 = vmatpush1.bf16.msra.mxu0 0
      %245 = vmatprep.subr.bf16.mxu0 0
      %246 = vmatpush1.bf16.msra.mxu0 0
      %247 = vmatprep.subr.bf16.mxu0 0
      %248 = vmatpush1.bf16.msra.mxu0 0
      %249 = vmatprep.subr.bf16.mxu0 0
      %250 = vmatpush1.bf16.msra.mxu0 0
      %251 = vmatprep.subr.bf16.mxu0 0
      %252 = vmatpush1.bf16.msra.mxu0 0
      %253 = vmatprep.mubr.bf16.mxu0 0
      %254 = vmatmul.mubr.bf16.gmra.mrb[0].mxu0 %v210
      %v255 = vpop.f32.mrb[0].mxu0
      %v256 = vadd.f32 0.0, %v255
      %v257 = vpop.f32.mrb[0].mxu0
      %v258 = vpop.f32.mrb[0].mxu0
      %v259 = vadd.f32 0.0, %v258
      %v260 = vpop.f32.mrb[0].mxu0
      %261 = vmatprep.mubr.bf16.mxu0 0
      %262 = vmatmul.mubr.bf16.gmra.mrb[0].mxu0 %v213
      %v263 = vpop.f32.mrb[0].mxu0
      %v264 = vadd.f32 0.0, %v263
      %v265 = vpop.f32.mrb[0].mxu0
      %v266 = vpop.f32.mrb[0].mxu0
      %v267 = vadd.f32 0.0, %v266
      %v268 = vpop.f32.mrb[0].mxu0
      %269 = vmatprep.mubr.bf16.mxu0 0
      %270 = vmatmul.mubr.bf16.gmra.mrb[0].mxu0 %v216
      %v271 = vpop.f32.mrb[0].mxu0
      %v272 = vadd.f32 0.0, %v271
      %v273 = vpop.f32.mrb[0].mxu0
      %v274 = vpop.f32.mrb[0].mxu0
      %v275 = vadd.f32 0.0, %v274
      %v276 = vpop.f32.mrb[0].mxu0
      %277 = vmatprep.mubr.bf16.mxu0 0
      %278 = vmatmul.mubr.bf16.gmra.mrb[0].mxu0 %v219
      %v279 = vpop.f32.mrb[0].mxu0
      %v280 = vadd.f32 0.0, %v279
      %v281 = vpop.f32.mrb[0].mxu0
      %v282 = vpop.f32.mrb[0].mxu0
      %v283 = vadd.f32 0.0, %v282
      %v284 = vpop.f32.mrb[0].mxu0
      %285 = vdwg.mxu0
      %v286 = vpack.c.bf16 %v259, %v256
      %v287 = vpack.c.bf16 %v267, %v264
      %v288 = vpack.c.bf16 %v275, %v272
      %v289 = vpack.c.bf16 %v283, %v280
      %v294 = vunpack.c.l.b16 %v286
      %v295 = vunpack.c.h.b16 %v286
      %v296 = vunpack.c.l.b16 %v287
      %v297 = vunpack.c.h.b16 %v287
      %v298 = vunpack.c.l.b16 %v288
      %v299 = vunpack.c.h.b16 %v288
      %v300 = vunpack.c.l.b16 %v289
      %v301 = vunpack.c.h.b16 %v289
      %v302 = vpack.c.b16 %v294, %v294
      %v303 = vpack.c.b16 %v295, %v295
      %v304 = vpack.c.b16 %v296, %v296
      %v305 = vpack.c.b16 %v297, %v297
      %v306 = vpack.c.b16 %v298, %v298
      %v307 = vpack.c.b16 %v299, %v299
      %v308 = vpack.c.b16 %v300, %v300
      %v309 = vpack.c.b16 %v301, %v301
      %318 = vst [vmem:[%s145] sm:$0xf] %v302
      %319 = vst [vmem:[%s145 + $0x4] sm:$0xf] %v303
      %320 = vst [vmem:[%s145 + $0x8] sm:$0xf] %v304
      %321 = vst [vmem:[%s145 + $0xc] sm:$0xf] %v305
      %322 = vst [vmem:[%s145 + $0x10] sm:$0xf] %v306
      %323 = vst [vmem:[%s145 + $0x14] sm:$0xf] %v307
      %324 = vst [vmem:[%s145 + $0x18] sm:$0xf] %v308
      %325 = vst [vmem:[%s145 + $0x1c] sm:$0xf] %v309
      %s326 = smul.u32 8, %s13
      %p327 = scmp.lt.s32.totalorder %s326, 15
      %s328 = scalar_select %p327, %s326, 15
      %s329 = smul.addr %s328, 4
      %s330 = scalar_lea.vmem %s2, %s329
      // Predicated region
      $region29: #{net_forward.6} parent=27 // pred_check
        %p331 = pneg %p78
      $region30: #{net_forward.6} parent=27 // pred_check_branch
        %333 = sbr.rel (%p331) target = $region32
      $region31: #{net_forward.6} parent=27 // pred_region
        %s334 = smul.u32 8, %s13
      $region32: #{net_forward.6} parent=27 // pred_fallthru
        _
    $region28: #{net_forward.6} parent=5 // pred_fallthru
      _
    %p335 = scmp.le.s32.totalorder 2, %s8
    // Predicated region
    $region33: #{net_forward.6} parent=5 // pred_check
      %p336 = pneg %p335
    $region34: #{net_forward.6} parent=5 // pred_check_branch
      %338 = sbr.rel (%p336) target = $region36
    $region35: #{net_forward.6} parent=5 // pred_region
      %s339 = ssub.s32 %s8, 2
      // Predicated region
      $region37: #{net_forward.6} parent=35 // pred_check
        %p340 = pneg %p84
      $region38: #{net_forward.6} parent=35 // pred_check_branch
        %342 = sbr.rel (%p340) target = $region40
      $region39: #{net_forward.6} parent=35 // pred_region
        %s343 = smul.u32 8, %s14
        %p344 = scmp.lt.s32.totalorder %s343, 15
        %s345 = scalar_select %p344, %s343, 15
        %s346 = smul.addr %s345, 4
        %s347 = scalar_lea.vmem %s2, %s346
      $region40: #{net_forward.6} parent=35 // pred_fallthru
        _
    $region36: #{net_forward.6} parent=5 // pred_fallthru
      _
  $region6: #{net_forward.6} parent=0 // loop_footer
    %s12 = sadd.s32 1, %s8
  $region7: #{net_forward.6} parent=0 // loop_footer_branch
    %7 = sbr.rel target = $region3
  $region8: #{net_forward.6} parent=0 // loop_exit
    _

// kernel: net_forward.10
$region0: #{net_forward.10}
  #allocation0 [shape = 'u32[]', space=smem, size = 0x4, offset = 0x4, fixed_abs, tag = 'smem constant byte address 0x4 - core index']
  #allocation1 [shape = 'u32[144,128]{1,0:T(1,128)}', space=vmem, size = 0x12000, scoped, tag = 'internal scratch']
  %s0 = inlined_call_operand.vmem [shape: bf16[128,128], index: 0, kind: input, shape index: {}]
  %s1 = inlined_call_operand.vmem [shape: f32[1,128], index: 1, kind: input, shape index: {}]
  %s2 = inlined_call_operand.vmem [shape: bf16[128,128], index: 2, kind: input, shape index: {}]
  %s3 = inlined_call_operand.vmem [shape: bf16[128,128], index: 3, kind: output, shape index: {}]
  %s4 = sld [smem:[#allocation0]]
  $region45: #{net_forward.10} parent=0
    _
  %s6 = ssub.s32 1, %s4
  %s7 = scalar_select 0, %s6, %s4
  loop: start=0, step=1, limit=4
  $region2: #{net_forward.10} parent=0 // loop_pre_header
    _
  $region3: #{net_forward.10} parent=0 // loop_header
    %s9 = sphi 0, %s13
    %p10 = scmp.ge.s32.totalorder %s9, 4
    %s19 = sphi 0, %s21
    %s22 = sphi 0, %s19
    %s23 = sphi 0, %s22
    %s39 = sphi 0, %s23
    %s43 = sphi 0, %s43
    %s45 = sphi 0, %s43
    %s46 = sphi 0, %s45
    %s60 = sphi 0, %s46
    %s64 = sphi 0, %s64
    %s66 = sphi 0, %s64
    %s67 = sphi 0, %s66
    %s81 = sphi 0, %s67
    %s87 = sphi 0, %s89
    %s90 = sphi 0, %s87
    %s91 = sphi 0, %s90
    %s107 = sphi 0, %s91
  $region4: #{net_forward.10} parent=0 // loop_header_branch
    %12 = sbr.rel (%p10) target = $region8
  $region5: #{net_forward.10} parent=0 // loop_body
    %s14 = ssub.s32 %s9, 1
    %s15 = ssub.s32 %s9, 2
    %s16 = sadd.s32 %s9, 1
    %s17 = ssub.s32 %s9, %s16
    %p18 = scmp.eq.s32.totalorder %s17, 0
    %s20 = sadd.s32 %s19, 1
    %s21 = scalar_select %p18, %s19, %s20
    %p24 = pneg %p18
    %p25 = scmp.eq.s32.totalorder %s9, 1
    %p26 = por %p24, %p25
    %p27 = scmp.ne.s32.totalorder %s19, %s22
    %p28 = scmp.eq.s32.totalorder %s9, 0
    %p29 = por %p27, %p28
    %p30 = scmp.ne.s32.totalorder %s19, %s22
    %p31 = scmp.eq.s32.totalorder %s14, 1
    %p32 = por %p30, %p31
    %p33 = scmp.ne.s32.totalorder %s22, %s23
    %p34 = scmp.eq.s32.totalorder %s14, 0
    %p35 = por %p33, %p34
    %p36 = scmp.ne.s32.totalorder %s22, %s23
    %p37 = scmp.eq.s32.totalorder %s15, 1
    %p38 = por %p36, %p37
    %p40 = scmp.ne.s32.totalorder %s23, %s39
    %p41 = scmp.eq.s32.totalorder %s15, 0
    %p42 = por %p40, %p41
    %s44 = sadd.s32 %s43, 1
    %p47 = scmp.eq.s32.totalorder %s9, 1
    %p48 = scmp.ne.s32.totalorder %s43, %s45
    %p49 = scmp.eq.s32.totalorder %s9, 0
    %p50 = por %p48, %p49
    %p51 = scmp.ne.s32.totalorder %s43, %s45
    %p52 = scmp.eq.s32.totalorder %s14, 1
    %p53 = por %p51, %p52
    %p54 = scmp.ne.s32.totalorder %s45, %s46
    %p55 = scmp.eq.s32.totalorder %s14, 0
    %p56 = por %p54, %p55
    %p57 = scmp.ne.s32.totalorder %s45, %s46
    %p58 = scmp.eq.s32.totalorder %s15, 1
    %p59 = por %p57, %p58
    %p61 = scmp.ne.s32.totalorder %s46, %s60
    %p62 = scmp.eq.s32.totalorder %s15, 0
    %p63 = por %p61, %p62
    %s65 = sadd.s32 %s64, 1
    %p68 = scmp.eq.s32.totalorder %s9, 1
    %p69 = scmp.ne.s32.totalorder %s64, %s66
    %p70 = scmp.eq.s32.totalorder %s9, 0
    %p71 = por %p69, %p70
    %p72 = scmp.ne.s32.totalorder %s64, %s66
    %p73 = scmp.eq.s32.totalorder %s14, 1
    %p74 = por %p72, %p73
    %p75 = scmp.ne.s32.totalorder %s66, %s67
    %p76 = scmp.eq.s32.totalorder %s14, 0
    %p77 = por %p75, %p76
    %p78 = scmp.ne.s32.totalorder %s66, %s67
    %p79 = scmp.eq.s32.totalorder %s15, 1
    %p80 = por %p78, %p79
    %p82 = scmp.ne.s32.totalorder %s67, %s81
    %p83 = scmp.eq.s32.totalorder %s15, 0
    %p84 = por %p82, %p83
    %s85 = ssub.s32 %s9, %s16
    %p86 = scmp.eq.s32.totalorder %s85, 0
    %s88 = sadd.s32 %s87, 1
    %s89 = scalar_select %p86, %s87, %s88
    %p92 = pneg %p86
    %p93 = scmp.eq.s32.totalorder %s9, 1
    %p94 = por %p92, %p93
    %p95 = scmp.ne.s32.totalorder %s87, %s90
    %p96 = scmp.eq.s32.totalorder %s9, 0
    %p97 = por %p95, %p96
    %p98 = scmp.ne.s32.totalorder %s87, %s90
    %p99 = scmp.eq.s32.totalorder %s14, 1
    %p100 = por %p98, %p99
    %p101 = scmp.ne.s32.totalorder %s90, %s91
    %p102 = scmp.eq.s32.totalorder %s14, 0
    %p103 = por %p101, %p102
    %p104 = scmp.ne.s32.totalorder %s90, %s91
    %p105 = scmp.eq.s32.totalorder %s15, 1
    %p106 = por %p104, %p105
    %p108 = scmp.ne.s32.totalorder %s91, %s107
    %p109 = scmp.eq.s32.totalorder %s15, 0
    %p110 = por %p108, %p109
    %p111 = scmp.le.s32.totalorder 1, %s9
    %p112 = scmp.lt.s32.totalorder %s9, 3
    %p113 = pnand %p111, %p112
    %p114 = pneg %p113
    // Predicated region
    $region9: #{net_forward.10} parent=5 // pred_check
      _
    $region10: #{net_forward.10} parent=5 // pred_check_branch
      %116 = sbr.rel (%p113) target = $region12
    $region11: #{net_forward.10} parent=5 // pred_region
      %s117 = ssub.s32 %s9, 1
      // Predicated region
      $region13: #{net_forward.10} parent=11 // pred_check
        %p118 = pneg %p56
      $region14: #{net_forward.10} parent=11 // pred_check_branch
        %120 = sbr.rel (%p118) target = $region16
      $region15: #{net_forward.10} parent=11 // pred_region
        _
      $region16: #{net_forward.10} parent=11 // pred_fallthru
        _
      // Predicated region
      $region17: #{net_forward.10} parent=11 // pred_check
        %p121 = pneg %p77
      $region18: #{net_forward.10} parent=11 // pred_check_branch
        %123 = sbr.rel (%p121) target = $region20
      $region19: #{net_forward.10} parent=11 // pred_region
        _
      $region20: #{net_forward.10} parent=11 // pred_fallthru
        _
    $region12: #{net_forward.10} parent=5 // pred_fallthru
      _
    %p124 = scmp.lt.s32.totalorder %s9, 2
    // Predicated region
    $region21: #{net_forward.10} parent=5 // pred_check
      %p125 = pneg %p124
    $region22: #{net_forward.10} parent=5 // pred_check_branch
      %127 = sbr.rel (%p125) target = $region24
    $region23: #{net_forward.10} parent=5 // pred_region
      // Predicated region
      $region25: #{net_forward.10} parent=23 // pred_check
        %p128 = pneg %p29
      $region26: #{net_forward.10} parent=23 // pred_check_branch
        %130 = sbr.rel (%p128) target = $region28
      $region27: #{net_forward.10} parent=23 // pred_region
        %s131 = smul.u32 8, %s9
        %p132 = scmp.lt.s32.totalorder %s131, 15
        %s133 = scalar_select %p132, %s131, 15
        %s134 = smul.addr %s133, 4
        %s135 = scalar_lea.vmem %s0, %s134
        %s136 = smul.u32 8, %s9
      $region28: #{net_forward.10} parent=23 // pred_fallthru
        _
    $region24: #{net_forward.10} parent=5 // pred_fallthru
      _
    %p137 = scmp.le.s32.totalorder 1, %s9
    %p138 = scmp.lt.s32.totalorder %s9, 3
    %p139 = pnand %p137, %p138
    %p140 = pneg %p139
    // Predicated region
    $region29: #{net_forward.10} parent=5 // pred_check
      _
    $region30: #{net_forward.10} parent=5 // pred_check_branch
      %142 = sbr.rel (%p139) target = $region32
    $region31: #{net_forward.10} parent=5 // pred_region
      %s143 = ssub.s32 %s9, 1
      %s144 = smul.u32 8, %s14
      %p145 = scmp.lt.s32.totalorder %s144, 15
      %s146 = scalar_select %p145, %s144, 15
      %s147 = smul.addr %s146, 4
      %s148 = scalar_lea.vmem %s0, %s147
      %p149 = pneg %p35
      %p150 = pneg %p32
      %p151 = pneg %p56
      %p152 = pneg %p53
      %p153 = pneg %p77
      %p154 = pneg %p74
      %p155 = pneg %p103
      %p156 = pneg %p100
      %s157 = smul.u32 8, %s14
      %p158 = scmp.lt.s32.totalorder %s157, 15
      %s159 = scalar_select %p158, %s157, 15
      %s160 = smul.addr %s159, 4
      %s161 = scalar_lea.vmem %s3, %s160
      %s162 = smul.u32 8, %s14
      %p163 = scmp.lt.s32.totalorder %s162, 15
      %s164 = scalar_select %p163, %s162, 15
      %s165 = smul.addr %s164, 4
      %s166 = scalar_lea.vmem %s0, %s165
      %s167 = smul.u32 8, %s14
      %s168 = smul.u32 8, %s14
      %p169 = scmp.lt.s32.totalorder %s168, 15
      %s170 = scalar_select %p169, %s168, 15
      %s171 = smul.addr %s170, 4
      %s172 = scalar_lea.vmem %s3, %s171
      %s173 = smul.u32 8, %s14
      %v175 = vld [vmem:[%s166] sm:$0xf]
      %v176 = vld [vmem:[%s166 + $0x4] sm:$0xf]
      %v177 = vld [vmem:[%s166 + $0x8] sm:$0xf]
      %v178 = vld [vmem:[%s166 + $0xc] sm:$0xf]
      %v179 = vld [vmem:[%s166 + $0x10] sm:$0xf]
      %v180 = vld [vmem:[%s166 + $0x14] sm:$0xf]
      %v181 = vld [vmem:[%s166 + $0x18] sm:$0xf]
      %v182 = vld [vmem:[%s166 + $0x1c] sm:$0xf]
      %v183 = vld [vmem:[%s1] sm:$0x1]
      %v184 = vld [vmem:[%s2] sm:$0xf]
      %v185 = vld [vmem:[%s2 + $0x4] sm:$0xf]
      %v186 = vld [vmem:[%s2 + $0x8] sm:$0xf]
      %v187 = vld [vmem:[%s2 + $0xc] sm:$0xf]
      %v188 = vld [vmem:[%s2 + $0x10] sm:$0xf]
      %v189 = vld [vmem:[%s2 + $0x14] sm:$0xf]
      %v190 = vld [vmem:[%s2 + $0x18] sm:$0xf]
      %v191 = vld [vmem:[%s2 + $0x1c] sm:$0xf]
      %v192 = vld [vmem:[%s2 + $0x20] sm:$0xf]
      %v193 = vld [vmem:[%s2 + $0x24] sm:$0xf]
      %v194 = vld [vmem:[%s2 + $0x28] sm:$0xf]
      %v195 = vld [vmem:[%s2 + $0x2c] sm:$0xf]
      %v196 = vld [vmem:[%s2 + $0x30] sm:$0xf]
      %v197 = vld [vmem:[%s2 + $0x34] sm:$0xf]
      %v198 = vld [vmem:[%s2 + $0x38] sm:$0xf]
      %v199 = vld [vmem:[%s2 + $0x3c] sm:$0xf]
      %v200 = vunpack.c.l.bf16 %v175
      %v201 = vunpack.c.l.bf16 %v176
      %v202 = vunpack.c.l.bf16 %v177
      %v203 = vunpack.c.l.bf16 %v178
      %v204 = vunpack.c.l.bf16 %v179
      %v205 = vunpack.c.l.bf16 %v180
      %v206 = vunpack.c.l.bf16 %v181
      %v207 = vunpack.c.l.bf16 %v182
      %v209 = vlaneseq
      %v210 = vshrl.u32 %v209, 7
      %v211 = vsub.s32 0, %v210
      %v212 = vrot.slane %v183, %v211
      %v214 = vadd.f32 %v200, %v212
      %v215 = vadd.f32 %v201, %v212
      %v216 = vadd.f32 %v202, %v212
      %v217 = vadd.f32 %v203, %v212
      %v218 = vadd.f32 %v204, %v212
      %v219 = vadd.f32 %v205, %v212
      %v220 = vadd.f32 %v206, %v212
      %v221 = vadd.f32 %v207, %v212
      %v222 = vmax.f32 %v214, 0.0
      %v223 = vmax.f32 %v215, 0.0
      %v224 = vmax.f32 %v216, 0.0
      %v225 = vmax.f32 %v217, 0.0
      %v226 = vmax.f32 %v218, 0.0
      %v227 = vmax.f32 %v219, 0.0
      %v228 = vmax.f32 %v220, 0.0
      %v229 = vmax.f32 %v221, 0.0
      %v230 = vpack.c.bf16 %v223, %v222
      %v231 = vpack.c.bf16 %v225, %v224
      %v232 = vpack.c.bf16 %v227, %v226
      %v233 = vpack.c.bf16 %v229, %v228
      %v250 = vunpack.c.l.b16 %v184
      %v251 = vunpack.c.l.b16 %v185
      %v252 = vunpack.c.l.b16 %v186
      %v253 = vunpack.c.l.b16 %v187
      %v254 = vunpack.c.l.b16 %v188
      %v255 = vunpack.c.l.b16 %v189
      %v256 = vunpack.c.l.b16 %v190
      %v257 = vunpack.c.l.b16 %v191
      %v258 = vunpack.c.l.b16 %v192
      %v259 = vunpack.c.l.b16 %v193
      %v260 = vunpack.c.l.b16 %v194
      %v261 = vunpack.c.l.b16 %v195
      %v262 = vunpack.c.l.b16 %v196
      %v263 = vunpack.c.l.b16 %v197
      %v264 = vunpack.c.l.b16 %v198
      %v265 = vunpack.c.l.b16 %v199
      %v266 = vpack.c.b16 %v251, %v250
      %v267 = vpack.c.b16 %v253, %v252
      %v268 = vpack.c.b16 %v255, %v254
      %v269 = vpack.c.b16 %v257, %v256
      %v270 = vpack.c.b16 %v259, %v258
      %v271 = vpack.c.b16 %v261, %v260
      %v272 = vpack.c.b16 %v263, %v262
      %v273 = vpack.c.b16 %v265, %v264
      %282 = vmatprep.subr.bf16.mxu0 0
      %283 = vmatpush1.bf16.msra.mxu0 %v266
      %284 = vmatprep.subr.bf16.mxu0 0
      %285 = vmatpush1.bf16.msra.mxu0 %v267
      %286 = vmatprep.subr.bf16.mxu0 0
      %287 = vmatpush1.bf16.msra.mxu0 %v268
      %288 = vmatprep.subr.bf16.mxu0 0
      %289 = vmatpush1.bf16.msra.mxu0 %v269
      %290 = vmatprep.subr.bf16.mxu0 0
      %291 = vmatpush1.bf16.msra.mxu0 %v270
      %292 = vmatprep.subr.bf16.mxu0 0
      %293 = vmatpush1.bf16.msra.mxu0 %v271
      %294 = vmatprep.subr.bf16.mxu0 0
      %295 = vmatpush1.bf16.msra.mxu0 %v272
      %296 = vmatprep.subr.bf16.mxu0 0
      %297 = vmatpush1.bf16.msra.mxu0 %v273
      %298 = vmatprep.subr.bf16.mxu0 0
      %299 = vmatpush1.bf16.msra.mxu0 0
      %300 = vmatprep.subr.bf16.mxu0 0
      %301 = vmatpush1.bf16.msra.mxu0 0
      %302 = vmatprep.subr.bf16.mxu0 0
      %303 = vmatpush1.bf16.msra.mxu0 0
      %304 = vmatprep.subr.bf16.mxu0 0
      %305 = vmatpush1.bf16.msra.mxu0 0
      %306 = vmatprep.subr.bf16.mxu0 0
      %307 = vmatpush1.bf16.msra.mxu0 0
      %308 = vmatprep.subr.bf16.mxu0 0
      %309 = vmatpush1.bf16.msra.mxu0 0
      %310 = vmatprep.subr.bf16.mxu0 0
      %311 = vmatpush1.bf16.msra.mxu0 0
      %312 = vmatprep.subr.bf16.mxu0 0
      %313 = vmatpush1.bf16.msra.mxu0 0
      %314 = vmatprep.mubr.bf16.mxu0 0
      %315 = vmatmul.mubr.bf16.gmra.mrb[0].mxu0 %v230
      %v316 = vpop.f32.mrb[0].mxu0
      %v317 = vadd.f32 0.0, %v316
      %v318 = vpop.f32.mrb[0].mxu0
      %v319 = vpop.f32.mrb[0].mxu0
      %v320 = vadd.f32 0.0, %v319
      %v321 = vpop.f32.mrb[0].mxu0
      %322 = vmatprep.mubr.bf16.mxu0 0
      %323 = vmatmul.mubr.bf16.gmra.mrb[0].mxu0 %v231
      %v324 = vpop.f32.mrb[0].mxu0
      %v325 = vadd.f32 0.0, %v324
      %v326 = vpop.f32.mrb[0].mxu0
      %v327 = vpop.f32.mrb[0].mxu0
      %v328 = vadd.f32 0.0, %v327
      %v329 = vpop.f32.mrb[0].mxu0
      %330 = vmatprep.mubr.bf16.mxu0 0
      %331 = vmatmul.mubr.bf16.gmra.mrb[0].mxu0 %v232
      %v332 = vpop.f32.mrb[0].mxu0
      %v333 = vadd.f32 0.0, %v332
      %v334 = vpop.f32.mrb[0].mxu0
      %v335 = vpop.f32.mrb[0].mxu0
      %v336 = vadd.f32 0.0, %v335
      %v337 = vpop.f32.mrb[0].mxu0
      %338 = vmatprep.mubr.bf16.mxu0 0
      %339 = vmatmul.mubr.bf16.gmra.mrb[0].mxu0 %v233
      %v340 = vpop.f32.mrb[0].mxu0
      %v341 = vadd.f32 0.0, %v340
      %v342 = vpop.f32.mrb[0].mxu0
      %v343 = vpop.f32.mrb[0].mxu0
      %v344 = vadd.f32 0.0, %v343
      %v345 = vpop.f32.mrb[0].mxu0
      %346 = vdwg.mxu0
      %v347 = vpack.c.bf16 %v320, %v317
      %v348 = vpack.c.bf16 %v328, %v325
      %v349 = vpack.c.bf16 %v336, %v333
      %v350 = vpack.c.bf16 %v344, %v341
      %v355 = vunpack.c.l.b16 %v347
      %v356 = vunpack.c.h.b16 %v347
      %v357 = vunpack.c.l.b16 %v348
      %v358 = vunpack.c.h.b16 %v348
      %v359 = vunpack.c.l.b16 %v349
      %v360 = vunpack.c.h.b16 %v349
      %v361 = vunpack.c.l.b16 %v350
      %v362 = vunpack.c.h.b16 %v350
      %v363 = vpack.c.b16 %v355, %v355
      %v364 = vpack.c.b16 %v356, %v356
      %v365 = vpack.c.b16 %v357, %v357
      %v366 = vpack.c.b16 %v358, %v358
      %v367 = vpack.c.b16 %v359, %v359
      %v368 = vpack.c.b16 %v360, %v360
      %v369 = vpack.c.b16 %v361, %v361
      %v370 = vpack.c.b16 %v362, %v362
      %379 = vst [vmem:[%s172] sm:$0xf] %v363
      %380 = vst [vmem:[%s172 + $0x4] sm:$0xf] %v364
      %381 = vst [vmem:[%s172 + $0x8] sm:$0xf] %v365
      %382 = vst [vmem:[%s172 + $0xc] sm:$0xf] %v366
      %383 = vst [vmem:[%s172 + $0x10] sm:$0xf] %v367
      %384 = vst [vmem:[%s172 + $0x14] sm:$0xf] %v368
      %385 = vst [vmem:[%s172 + $0x18] sm:$0xf] %v369
      %386 = vst [vmem:[%s172 + $0x1c] sm:$0xf] %v370
      %s387 = smul.u32 8, %s14
      %p388 = scmp.lt.s32.totalorder %s387, 15
      %s389 = scalar_select %p388, %s387, 15
      %s390 = smul.addr %s389, 4
      %s391 = scalar_lea.vmem %s3, %s390
      // Predicated region
      $region33: #{net_forward.10} parent=31 // pred_check
        %p392 = pneg %p100
      $region34: #{net_forward.10} parent=31 // pred_check_branch
        %394 = sbr.rel (%p392) target = $region36
      $region35: #{net_forward.10} parent=31 // pred_region
        %s395 = smul.u32 8, %s14
      $region36: #{net_forward.10} parent=31 // pred_fallthru
        _
    $region32: #{net_forward.10} parent=5 // pred_fallthru
      _
    %p396 = scmp.le.s32.totalorder 2, %s9
    // Predicated region
    $region37: #{net_forward.10} parent=5 // pred_check
      %p397 = pneg %p396
    $region38: #{net_forward.10} parent=5 // pred_check_branch
      %399 = sbr.rel (%p397) target = $region40
    $region39: #{net_forward.10} parent=5 // pred_region
      %s400 = ssub.s32 %s9, 2
      // Predicated region
      $region41: #{net_forward.10} parent=39 // pred_check
        %p401 = pneg %p106
      $region42: #{net_forward.10} parent=39 // pred_check_branch
        %403 = sbr.rel (%p401) target = $region44
      $region43: #{net_forward.10} parent=39 // pred_region
        %s404 = smul.u32 8, %s15
        %p405 = scmp.lt.s32.totalorder %s404, 15
        %s406 = scalar_select %p405, %s404, 15
        %s407 = smul.addr %s406, 4
        %s408 = scalar_lea.vmem %s3, %s407
      $region44: #{net_forward.10} parent=39 // pred_fallthru
        _
    $region40: #{net_forward.10} parent=5 // pred_fallthru
      _
  $region6: #{net_forward.10} parent=0 // loop_footer
    %s13 = sadd.s32 1, %s9
  $region7: #{net_forward.10} parent=0 // loop_footer_branch
    %8 = sbr.rel target = $region3
  $region8: #{net_forward.10} parent=0 // loop_exit
    _

// kernel: net_forward.7
$region0: #{net_forward.7}
  #allocation0 [shape = 'u32[]', space=smem, size = 0x4, offset = 0x4, fixed_abs, tag = 'smem constant byte address 0x4 - core index']
  #allocation1 [shape = 'u32[144,128]{1,0:T(1,128)}', space=vmem, size = 0x12000, scoped, tag = 'internal scratch']
  %s0 = inlined_call_operand.vmem [shape: bf16[128,128], index: 0, kind: input, shape index: {}]
  %s1 = inlined_call_operand.vmem [shape: bf16[128,128], index: 1, kind: input, shape index: {}]
  %s2 = inlined_call_operand.vmem [shape: f32[1,128], index: 2, kind: input, shape index: {}]
  %s3 = inlined_call_operand.vmem [shape: bf16[128,128], index: 3, kind: input, shape index: {}]
  %s4 = inlined_call_operand.vmem [shape: bf16[128,128], index: 4, kind: output, shape index: {}]
  %s5 = sld [smem:[#allocation0]]
  $region49: #{net_forward.7} parent=0
    _
  %s7 = ssub.s32 1, %s5
  %s8 = scalar_select 0, %s7, %s5
  loop: start=0, step=1, limit=4
  $region2: #{net_forward.7} parent=0 // loop_pre_header
    _
  $region3: #{net_forward.7} parent=0 // loop_header
    %s10 = sphi 0, %s14
    %p11 = scmp.ge.s32.totalorder %s10, 4
    %s20 = sphi 0, %s22
    %s23 = sphi 0, %s20
    %s24 = sphi 0, %s23
    %s40 = sphi 0, %s24
    %s44 = sphi 0, %s44
    %s46 = sphi 0, %s44
    %s47 = sphi 0, %s46
    %s61 = sphi 0, %s47
    %s65 = sphi 0, %s65
    %s67 = sphi 0, %s65
    %s68 = sphi 0, %s67
    %s82 = sphi 0, %s68
    %s86 = sphi 0, %s86
    %s88 = sphi 0, %s86
    %s89 = sphi 0, %s88
    %s103 = sphi 0, %s89
    %s109 = sphi 0, %s111
    %s112 = sphi 0, %s109
    %s113 = sphi 0, %s112
    %s129 = sphi 0, %s113
  $region4: #{net_forward.7} parent=0 // loop_header_branch
    %13 = sbr.rel (%p11) target = $region8
  $region5: #{net_forward.7} parent=0 // loop_body
    %s15 = ssub.s32 %s10, 1
    %s16 = ssub.s32 %s10, 2
    %s17 = sadd.s32 %s10, 1
    %s18 = ssub.s32 %s10, %s17
    %p19 = scmp.eq.s32.totalorder %s18, 0
    %s21 = sadd.s32 %s20, 1
    %s22 = scalar_select %p19, %s20, %s21
    %p25 = pneg %p19
    %p26 = scmp.eq.s32.totalorder %s10, 1
    %p27 = por %p25, %p26
    %p28 = scmp.ne.s32.totalorder %s20, %s23
    %p29 = scmp.eq.s32.totalorder %s10, 0
    %p30 = por %p28, %p29
    %p31 = scmp.ne.s32.totalorder %s20, %s23
    %p32 = scmp.eq.s32.totalorder %s15, 1
    %p33 = por %p31, %p32
    %p34 = scmp.ne.s32.totalorder %s23, %s24
    %p35 = scmp.eq.s32.totalorder %s15, 0
    %p36 = por %p34, %p35
    %p37 = scmp.ne.s32.totalorder %s23, %s24
    %p38 = scmp.eq.s32.totalorder %s16, 1
    %p39 = por %p37, %p38
    %p41 = scmp.ne.s32.totalorder %s24, %s40
    %p42 = scmp.eq.s32.totalorder %s16, 0
    %p43 = por %p41, %p42
    %s45 = sadd.s32 %s44, 1
    %p48 = scmp.eq.s32.totalorder %s10, 1
    %p49 = scmp.ne.s32.totalorder %s44, %s46
    %p50 = scmp.eq.s32.totalorder %s10, 0
    %p51 = por %p49, %p50
    %p52 = scmp.ne.s32.totalorder %s44, %s46
    %p53 = scmp.eq.s32.totalorder %s15, 1
    %p54 = por %p52, %p53
    %p55 = scmp.ne.s32.totalorder %s46, %s47
    %p56 = scmp.eq.s32.totalorder %s15, 0
    %p57 = por %p55, %p56
    %p58 = scmp.ne.s32.totalorder %s46, %s47
    %p59 = scmp.eq.s32.totalorder %s16, 1
    %p60 = por %p58, %p59
    %p62 = scmp.ne.s32.totalorder %s47, %s61
    %p63 = scmp.eq.s32.totalorder %s16, 0
    %p64 = por %p62, %p63
    %s66 = sadd.s32 %s65, 1
    %p69 = scmp.eq.s32.totalorder %s10, 1
    %p70 = scmp.ne.s32.totalorder %s65, %s67
    %p71 = scmp.eq.s32.totalorder %s10, 0
    %p72 = por %p70, %p71
    %p73 = scmp.ne.s32.totalorder %s65, %s67
    %p74 = scmp.eq.s32.totalorder %s15, 1
    %p75 = por %p73, %p74
    %p76 = scmp.ne.s32.totalorder %s67, %s68
    %p77 = scmp.eq.s32.totalorder %s15, 0
    %p78 = por %p76, %p77
    %p79 = scmp.ne.s32.totalorder %s67, %s68
    %p80 = scmp.eq.s32.totalorder %s16, 1
    %p81 = por %p79, %p80
    %p83 = scmp.ne.s32.totalorder %s68, %s82
    %p84 = scmp.eq.s32.totalorder %s16, 0
    %p85 = por %p83, %p84
    %s87 = sadd.s32 %s86, 1
    %p90 = scmp.eq.s32.totalorder %s10, 1
    %p91 = scmp.ne.s32.totalorder %s86, %s88
    %p92 = scmp.eq.s32.totalorder %s10, 0
    %p93 = por %p91, %p92
    %p94 = scmp.ne.s32.totalorder %s86, %s88
    %p95 = scmp.eq.s32.totalorder %s15, 1
    %p96 = por %p94, %p95
    %p97 = scmp.ne.s32.totalorder %s88, %s89
    %p98 = scmp.eq.s32.totalorder %s15, 0
    %p99 = por %p97, %p98
    %p100 = scmp.ne.s32.totalorder %s88, %s89
    %p101 = scmp.eq.s32.totalorder %s16, 1
    %p102 = por %p100, %p101
    %p104 = scmp.ne.s32.totalorder %s89, %s103
    %p105 = scmp.eq.s32.totalorder %s16, 0
    %p106 = por %p104, %p105
    %s107 = ssub.s32 %s10, %s17
    %p108 = scmp.eq.s32.totalorder %s107, 0
    %s110 = sadd.s32 %s109, 1
    %s111 = scalar_select %p108, %s109, %s110
    %p114 = pneg %p108
    %p115 = scmp.eq.s32.totalorder %s10, 1
    %p116 = por %p114, %p115
    %p117 = scmp.ne.s32.totalorder %s109, %s112
    %p118 = scmp.eq.s32.totalorder %s10, 0
    %p119 = por %p117, %p118
    %p120 = scmp.ne.s32.totalorder %s109, %s112
    %p121 = scmp.eq.s32.totalorder %s15, 1
    %p122 = por %p120, %p121
    %p123 = scmp.ne.s32.totalorder %s112, %s113
    %p124 = scmp.eq.s32.totalorder %s15, 0
    %p125 = por %p123, %p124
    %p126 = scmp.ne.s32.totalorder %s112, %s113
    %p127 = scmp.eq.s32.totalorder %s16, 1
    %p128 = por %p126, %p127
    %p130 = scmp.ne.s32.totalorder %s113, %s129
    %p131 = scmp.eq.s32.totalorder %s16, 0
    %p132 = por %p130, %p131
    %p133 = scmp.le.s32.totalorder 1, %s10
    %p134 = scmp.lt.s32.totalorder %s10, 3
    %p135 = pnand %p133, %p134
    %p136 = pneg %p135
    // Predicated region
    $region9: #{net_forward.7} parent=5 // pred_check
      _
    $region10: #{net_forward.7} parent=5 // pred_check_branch
      %138 = sbr.rel (%p135) target = $region12
    $region11: #{net_forward.7} parent=5 // pred_region
      %s139 = ssub.s32 %s10, 1
      // Predicated region
      $region13: #{net_forward.7} parent=11 // pred_check
        %p140 = pneg %p57
      $region14: #{net_forward.7} parent=11 // pred_check_branch
        %142 = sbr.rel (%p140) target = $region16
      $region15: #{net_forward.7} parent=11 // pred_region
        _
      $region16: #{net_forward.7} parent=11 // pred_fallthru
        _
      // Predicated region
      $region17: #{net_forward.7} parent=11 // pred_check
        %p143 = pneg %p78
      $region18: #{net_forward.7} parent=11 // pred_check_branch
        %145 = sbr.rel (%p143) target = $region20
      $region19: #{net_forward.7} parent=11 // pred_region
        _
      $region20: #{net_forward.7} parent=11 // pred_fallthru
        _
      // Predicated region
      $region21: #{net_forward.7} parent=11 // pred_check
        %p146 = pneg %p99
      $region22: #{net_forward.7} parent=11 // pred_check_branch
        %148 = sbr.rel (%p146) target = $region24
      $region23: #{net_forward.7} parent=11 // pred_region
        _
      $region24: #{net_forward.7} parent=11 // pred_fallthru
        _
    $region12: #{net_forward.7} parent=5 // pred_fallthru
      _
    %p149 = scmp.lt.s32.totalorder %s10, 2
    // Predicated region
    $region25: #{net_forward.7} parent=5 // pred_check
      %p150 = pneg %p149
    $region26: #{net_forward.7} parent=5 // pred_check_branch
      %152 = sbr.rel (%p150) target = $region28
    $region27: #{net_forward.7} parent=5 // pred_region
      // Predicated region
      $region29: #{net_forward.7} parent=27 // pred_check
        %p153 = pneg %p30
      $region30: #{net_forward.7} parent=27 // pred_check_branch
        %155 = sbr.rel (%p153) target = $region32
      $region31: #{net_forward.7} parent=27 // pred_region
        %s156 = smul.u32 8, %s10
        %p157 = scmp.lt.s32.totalorder %s156, 15
        %s158 = scalar_select %p157, %s156, 15
        %s159 = smul.addr %s158, 4
        %s160 = scalar_lea.vmem %s0, %s159
        %s161 = smul.u32 8, %s10
      $region32: #{net_forward.7} parent=27 // pred_fallthru
        _
    $region28: #{net_forward.7} parent=5 // pred_fallthru
      _
    %p162 = scmp.le.s32.totalorder 1, %s10
    %p163 = scmp.lt.s32.totalorder %s10, 3
    %p164 = pnand %p162, %p163
    %p165 = pneg %p164
    // Predicated region
    $region33: #{net_forward.7} parent=5 // pred_check
      _
    $region34: #{net_forward.7} parent=5 // pred_check_branch
      %167 = sbr.rel (%p164) target = $region36
    $region35: #{net_forward.7} parent=5 // pred_region
      %s168 = ssub.s32 %s10, 1
      %s169 = smul.u32 8, %s15
      %p170 = scmp.lt.s32.totalorder %s169, 15
      %s171 = scalar_select %p170, %s169, 15
      %s172 = smul.addr %s171, 4
      %s173 = scalar_lea.vmem %s0, %s172
      %p174 = pneg %p36
      %p175 = pneg %p33
      %p176 = pneg %p57
      %p177 = pneg %p54
      %p178 = pneg %p78
      %p179 = pneg %p75
      %p180 = pneg %p99
      %p181 = pneg %p96
      %p182 = pneg %p125
      %p183 = pneg %p122
      %s184 = smul.u32 8, %s15
      %p185 = scmp.lt.s32.totalorder %s184, 15
      %s186 = scalar_select %p185, %s184, 15
      %s187 = smul.addr %s186, 4
      %s188 = scalar_lea.vmem %s4, %s187
      %s189 = smul.u32 8, %s15
      %p190 = scmp.lt.s32.totalorder %s189, 15
      %s191 = scalar_select %p190, %s189, 15
      %s192 = smul.addr %s191, 4
      %s193 = scalar_lea.vmem %s0, %s192
      %s194 = smul.u32 8, %s15
      %s195 = smul.u32 8, %s15
      %p196 = scmp.lt.s32.totalorder %s195, 15
      %s197 = scalar_select %p196, %s195, 15
      %s198 = smul.addr %s197, 4
      %s199 = scalar_lea.vmem %s4, %s198
      %s200 = smul.u32 8, %s15
      %v202 = vld [vmem:[%s193] sm:$0xf]
      %v203 = vld [vmem:[%s193 + $0x4] sm:$0xf]
      %v204 = vld [vmem:[%s193 + $0x8] sm:$0xf]
      %v205 = vld [vmem:[%s193 + $0xc] sm:$0xf]
      %v206 = vld [vmem:[%s193 + $0x10] sm:$0xf]
      %v207 = vld [vmem:[%s193 + $0x14] sm:$0xf]
      %v208 = vld [vmem:[%s193 + $0x18] sm:$0xf]
      %v209 = vld [vmem:[%s193 + $0x1c] sm:$0xf]
      %v210 = vld [vmem:[%s1] sm:$0xf]
      %v211 = vld [vmem:[%s1 + $0x4] sm:$0xf]
      %v212 = vld [vmem:[%s1 + $0x8] sm:$0xf]
      %v213 = vld [vmem:[%s1 + $0xc] sm:$0xf]
      %v214 = vld [vmem:[%s1 + $0x10] sm:$0xf]
      %v215 = vld [vmem:[%s1 + $0x14] sm:$0xf]
      %v216 = vld [vmem:[%s1 + $0x18] sm:$0xf]
      %v217 = vld [vmem:[%s1 + $0x1c] sm:$0xf]
      %v218 = vld [vmem:[%s1 + $0x20] sm:$0xf]
      %v219 = vld [vmem:[%s1 + $0x24] sm:$0xf]
      %v220 = vld [vmem:[%s1 + $0x28] sm:$0xf]
      %v221 = vld [vmem:[%s1 + $0x2c] sm:$0xf]
      %v222 = vld [vmem:[%s1 + $0x30] sm:$0xf]
      %v223 = vld [vmem:[%s1 + $0x34] sm:$0xf]
      %v224 = vld [vmem:[%s1 + $0x38] sm:$0xf]
      %v225 = vld [vmem:[%s1 + $0x3c] sm:$0xf]
      %v226 = vld [vmem:[%s2] sm:$0x1]
      %v227 = vld [vmem:[%s3] sm:$0xf]
      %v228 = vld [vmem:[%s3 + $0x4] sm:$0xf]
      %v229 = vld [vmem:[%s3 + $0x8] sm:$0xf]
      %v230 = vld [vmem:[%s3 + $0xc] sm:$0xf]
      %v231 = vld [vmem:[%s3 + $0x10] sm:$0xf]
      %v232 = vld [vmem:[%s3 + $0x14] sm:$0xf]
      %v233 = vld [vmem:[%s3 + $0x18] sm:$0xf]
      %v234 = vld [vmem:[%s3 + $0x1c] sm:$0xf]
      %v235 = vld [vmem:[%s3 + $0x20] sm:$0xf]
      %v236 = vld [vmem:[%s3 + $0x24] sm:$0xf]
      %v237 = vld [vmem:[%s3 + $0x28] sm:$0xf]
      %v238 = vld [vmem:[%s3 + $0x2c] sm:$0xf]
      %v239 = vld [vmem:[%s3 + $0x30] sm:$0xf]
      %v240 = vld [vmem:[%s3 + $0x34] sm:$0xf]
      %v241 = vld [vmem:[%s3 + $0x38] sm:$0xf]
      %v242 = vld [vmem:[%s3 + $0x3c] sm:$0xf]
      %v244 = vlaneseq
      %v245 = vshrl.u32 %v244, 7
      %v246 = vsub.s32 0, %v245
      %v247 = vrot.slane %v226, %v246
      %v257 = vunpack.c.l.b16 %v202
      %v258 = vunpack.c.l.b16 %v203
      %v259 = vunpack.c.l.b16 %v204
      %v260 = vunpack.c.l.b16 %v205
      %v261 = vunpack.c.l.b16 %v206
      %v262 = vunpack.c.l.b16 %v207
      %v263 = vunpack.c.l.b16 %v208
      %v264 = vunpack.c.l.b16 %v209
      %v265 = vpack.c.b16 %v258, %v257
      %v266 = vpack.c.b16 %v260, %v259
      %v267 = vpack.c.b16 %v262, %v261
      %v268 = vpack.c.b16 %v264, %v263
      %v289 = vunpack.c.l.b16 %v210
      %v290 = vunpack.c.l.b16 %v211
      %v291 = vunpack.c.l.b16 %v212
      %v292 = vunpack.c.l.b16 %v213
      %v293 = vunpack.c.l.b16 %v214
      %v294 = vunpack.c.l.b16 %v215
      %v295 = vunpack.c.l.b16 %v216
      %v296 = vunpack.c.l.b16 %v217
      %v297 = vunpack.c.l.b16 %v218
      %v298 = vunpack.c.l.b16 %v219
      %v299 = vunpack.c.l.b16 %v220
      %v300 = vunpack.c.l.b16 %v221
      %v301 = vunpack.c.l.b16 %v222
      %v302 = vunpack.c.l.b16 %v223
      %v303 = vunpack.c.l.b16 %v224
      %v304 = vunpack.c.l.b16 %v225
      %v305 = vpack.c.b16 %v290, %v289
      %v306 = vpack.c.b16 %v292, %v291
      %v307 = vpack.c.b16 %v294, %v293
      %v308 = vpack.c.b16 %v296, %v295
      %v309 = vpack.c.b16 %v298, %v297
      %v310 = vpack.c.b16 %v300, %v299
      %v311 = vpack.c.b16 %v302, %v301
      %v312 = vpack.c.b16 %v304, %v303
      %321 = vmatprep.subr.bf16.mxu0 0
      %322 = vmatpush1.bf16.msra.mxu0 %v305
      %323 = vmatprep.subr.bf16.mxu0 0
      %324 = vmatpush1.bf16.msra.mxu0 %v306
      %325 = vmatprep.subr.bf16.mxu0 0
      %326 = vmatpush1.bf16.msra.mxu0 %v307
      %327 = vmatprep.subr.bf16.mxu0 0
      %328 = vmatpush1.bf16.msra.mxu0 %v308
      %329 = vmatprep.subr.bf16.mxu0 0
      %330 = vmatpush1.bf16.msra.mxu0 %v309
      %331 = vmatprep.subr.bf16.mxu0 0
      %332 = vmatpush1.bf16.msra.mxu0 %v310
      %333 = vmatprep.subr.bf16.mxu0 0
      %334 = vmatpush1.bf16.msra.mxu0 %v311
      %335 = vmatprep.subr.bf16.mxu0 0
      %336 = vmatpush1.bf16.msra.mxu0 %v312
      %337 = vmatprep.subr.bf16.mxu0 0
      %338 = vmatpush1.bf16.msra.mxu0 0
      %339 = vmatprep.subr.bf16.mxu0 0
      %340 = vmatpush1.bf16.msra.mxu0 0
      %341 = vmatprep.subr.bf16.mxu0 0
      %342 = vmatpush1.bf16.msra.mxu0 0
      %343 = vmatprep.subr.bf16.mxu0 0
      %344 = vmatpush1.bf16.msra.mxu0 0
      %345 = vmatprep.subr.bf16.mxu0 0
      %346 = vmatpush1.bf16.msra.mxu0 0
      %347 = vmatprep.subr.bf16.mxu0 0
      %348 = vmatpush1.bf16.msra.mxu0 0
      %349 = vmatprep.subr.bf16.mxu0 0
      %350 = vmatpush1.bf16.msra.mxu0 0
      %351 = vmatprep.subr.bf16.mxu0 0
      %352 = vmatpush1.bf16.msra.mxu0 0
      %353 = vmatprep.mubr.bf16.mxu0 0
      %354 = vmatmul.mubr.bf16.gmra.mrb[0].mxu0 %v265
      %v355 = vpop.f32.mrb[0].mxu0
      %v356 = vadd.f32 %v247, %v355
      %v357 = vpop.f32.mrb[0].mxu0
      %v358 = vpop.f32.mrb[0].mxu0
      %v359 = vadd.f32 %v247, %v358
      %v360 = vpop.f32.mrb[0].mxu0
      %361 = vmatprep.mubr.bf16.mxu0 0
      %362 = vmatmul.mubr.bf16.gmra.mrb[0].mxu0 %v266
      %v363 = vpop.f32.mrb[0].mxu0
      %v364 = vadd.f32 %v247, %v363
      %v365 = vpop.f32.mrb[0].mxu0
      %v366 = vpop.f32.mrb[0].mxu0
      %v367 = vadd.f32 %v247, %v366
      %v368 = vpop.f32.mrb[0].mxu0
      %369 = vmatprep.mubr.bf16.mxu0 0
      %370 = vmatmul.mubr.bf16.gmra.mrb[0].mxu0 %v267
      %v371 = vpop.f32.mrb[0].mxu0
      %v372 = vadd.f32 %v247, %v371
      %v373 = vpop.f32.mrb[0].mxu0
      %v374 = vpop.f32.mrb[0].mxu0
      %v375 = vadd.f32 %v247, %v374
      %v376 = vpop.f32.mrb[0].mxu0
      %377 = vmatprep.mubr.bf16.mxu0 0
      %378 = vmatmul.mubr.bf16.gmra.mrb[0].mxu0 %v268
      %v379 = vpop.f32.mrb[0].mxu0
      %v380 = vadd.f32 %v247, %v379
      %v381 = vpop.f32.mrb[0].mxu0
      %v382 = vpop.f32.mrb[0].mxu0
      %v383 = vadd.f32 %v247, %v382
      %v384 = vpop.f32.mrb[0].mxu0
      %385 = vdwg.mxu0
      %v386 = vmax.f32 %v356, 0.0
      %v387 = vmax.f32 %v359, 0.0
      %v388 = vmax.f32 %v364, 0.0
      %v389 = vmax.f32 %v367, 0.0
      %v390 = vmax.f32 %v372, 0.0
      %v391 = vmax.f32 %v375, 0.0
      %v392 = vmax.f32 %v380, 0.0
      %v393 = vmax.f32 %v383, 0.0
      %v394 = vpack.c.bf16 %v387, %v386
      %v395 = vpack.c.bf16 %v389, %v388
      %v396 = vpack.c.bf16 %v391, %v390
      %v397 = vpack.c.bf16 %v393, %v392
      %v414 = vunpack.c.l.b16 %v227
      %v415 = vunpack.c.l.b16 %v228
      %v416 = vunpack.c.l.b16 %v229
      %v417 = vunpack.c.l.b16 %v230
      %v418 = vunpack.c.l.b16 %v231
      %v419 = vunpack.c.l.b16 %v232
      %v420 = vunpack.c.l.b16 %v233
      %v421 = vunpack.c.l.b16 %v234
      %v422 = vunpack.c.l.b16 %v235
      %v423 = vunpack.c.l.b16 %v236
      %v424 = vunpack.c.l.b16 %v237
      %v425 = vunpack.c.l.b16 %v238
      %v426 = vunpack.c.l.b16 %v239
      %v427 = vunpack.c.l.b16 %v240
      %v428 = vunpack.c.l.b16 %v241
      %v429 = vunpack.c.l.b16 %v242
      %v430 = vpack.c.b16 %v415, %v414
      %v431 = vpack.c.b16 %v417, %v416
      %v432 = vpack.c.b16 %v419, %v418
      %v433 = vpack.c.b16 %v421, %v420
      %v434 = vpack.c.b16 %v423, %v422
      %v435 = vpack.c.b16 %v425, %v424
      %v436 = vpack.c.b16 %v427, %v426
      %v437 = vpack.c.b16 %v429, %v428
      %446 = vmatprep.subr.bf16.mxu0 0
      %447 = vmatpush1.bf16.msra.mxu0 %v430
      %448 = vmatprep.subr.bf16.mxu0 0
      %449 = vmatpush1.bf16.msra.mxu0 %v431
      %450 = vmatprep.subr.bf16.mxu0 0
      %451 = vmatpush1.bf16.msra.mxu0 %v432
      %452 = vmatprep.subr.bf16.mxu0 0
      %453 = vmatpush1.bf16.msra.mxu0 %v433
      %454 = vmatprep.subr.bf16.mxu0 0
      %455 = vmatpush1.bf16.msra.mxu0 %v434
      %456 = vmatprep.subr.bf16.mxu0 0
      %457 = vmatpush1.bf16.msra.mxu0 %v435
      %458 = vmatprep.subr.bf16.mxu0 0
      %459 = vmatpush1.bf16.msra.mxu0 %v436
      %460 = vmatprep.subr.bf16.mxu0 0
      %461 = vmatpush1.bf16.msra.mxu0 %v437
      %462 = vmatprep.subr.bf16.mxu0 0
      %463 = vmatpush1.bf16.msra.mxu0 0
      %464 = vmatprep.subr.bf16.mxu0 0
      %465 = vmatpush1.bf16.msra.mxu0 0
      %466 = vmatprep.subr.bf16.mxu0 0
      %467 = vmatpush1.bf16.msra.mxu0 0
      %468 = vmatprep.subr.bf16.mxu0 0
      %469 = vmatpush1.bf16.msra.mxu0 0
      %470 = vmatprep.subr.bf16.mxu0 0
      %471 = vmatpush1.bf16.msra.mxu0 0
      %472 = vmatprep.subr.bf16.mxu0 0
      %473 = vmatpush1.bf16.msra.mxu0 0
      %474 = vmatprep.subr.bf16.mxu0 0
      %475 = vmatpush1.bf16.msra.mxu0 0
      %476 = vmatprep.subr.bf16.mxu0 0
      %477 = vmatpush1.bf16.msra.mxu0 0
      %478 = vmatprep.mubr.bf16.mxu0 0
      %479 = vmatmul.mubr.bf16.gmra.mrb[0].mxu0 %v394
      %v480 = vpop.f32.mrb[0].mxu0
      %v481 = vadd.f32 0.0, %v480
      %v482 = vpop.f32.mrb[0].mxu0
      %v483 = vpop.f32.mrb[0].mxu0
      %v484 = vadd.f32 0.0, %v483
      %v485 = vpop.f32.mrb[0].mxu0
      %486 = vmatprep.mubr.bf16.mxu0 0
      %487 = vmatmul.mubr.bf16.gmra.mrb[0].mxu0 %v395
      %v488 = vpop.f32.mrb[0].mxu0
      %v489 = vadd.f32 0.0, %v488
      %v490 = vpop.f32.mrb[0].mxu0
      %v491 = vpop.f32.mrb[0].mxu0
      %v492 = vadd.f32 0.0, %v491
      %v493 = vpop.f32.mrb[0].mxu0
      %494 = vmatprep.mubr.bf16.mxu0 0
      %495 = vmatmul.mubr.bf16.gmra.mrb[0].mxu0 %v396
      %v496 = vpop.f32.mrb[0].mxu0
      %v497 = vadd.f32 0.0, %v496
      %v498 = vpop.f32.mrb[0].mxu0
      %v499 = vpop.f32.mrb[0].mxu0
      %v500 = vadd.f32 0.0, %v499
      %v501 = vpop.f32.mrb[0].mxu0
      %502 = vmatprep.mubr.bf16.mxu0 0
      %503 = vmatmul.mubr.bf16.gmra.mrb[0].mxu0 %v397
      %v504 = vpop.f32.mrb[0].mxu0
      %v505 = vadd.f32 0.0, %v504
      %v506 = vpop.f32.mrb[0].mxu0
      %v507 = vpop.f32.mrb[0].mxu0
      %v508 = vadd.f32 0.0, %v507
      %v509 = vpop.f32.mrb[0].mxu0
      %510 = vdwg.mxu0
      %v511 = vpack.c.bf16 %v484, %v481
      %v512 = vpack.c.bf16 %v492, %v489
      %v513 = vpack.c.bf16 %v500, %v497
      %v514 = vpack.c.bf16 %v508, %v505
      %v519 = vunpack.c.l.b16 %v511
      %v520 = vunpack.c.h.b16 %v511
      %v521 = vunpack.c.l.b16 %v512
      %v522 = vunpack.c.h.b16 %v512
      %v523 = vunpack.c.l.b16 %v513
      %v524 = vunpack.c.h.b16 %v513
      %v525 = vunpack.c.l.b16 %v514
      %v526 = vunpack.c.h.b16 %v514
      %v527 = vpack.c.b16 %v519, %v519
      %v528 = vpack.c.b16 %v520, %v520
      %v529 = vpack.c.b16 %v521, %v521
      %v530 = vpack.c.b16 %v522, %v522
      %v531 = vpack.c.b16 %v523, %v523
      %v532 = vpack.c.b16 %v524, %v524
      %v533 = vpack.c.b16 %v525, %v525
      %v534 = vpack.c.b16 %v526, %v526
      %543 = vst [vmem:[%s199] sm:$0xf] %v527
      %544 = vst [vmem:[%s199 + $0x4] sm:$0xf] %v528
      %545 = vst [vmem:[%s199 + $0x8] sm:$0xf] %v529
      %546 = vst [vmem:[%s199 + $0xc] sm:$0xf] %v530
      %547 = vst [vmem:[%s199 + $0x10] sm:$0xf] %v531
      %548 = vst [vmem:[%s199 + $0x14] sm:$0xf] %v532
      %549 = vst [vmem:[%s199 + $0x18] sm:$0xf] %v533
      %550 = vst [vmem:[%s199 + $0x1c] sm:$0xf] %v534
      %s551 = smul.u32 8, %s15
      %p552 = scmp.lt.s32.totalorder %s551, 15
      %s553 = scalar_select %p552, %s551, 15
      %s554 = smul.addr %s553, 4
      %s555 = scalar_lea.vmem %s4, %s554
      // Predicated region
      $region37: #{net_forward.7} parent=35 // pred_check
        %p556 = pneg %p122
      $region38: #{net_forward.7} parent=35 // pred_check_branch
        %558 = sbr.rel (%p556) target = $region40
      $region39: #{net_forward.7} parent=35 // pred_region
        %s559 = smul.u32 8, %s15
      $region40: #{net_forward.7} parent=35 // pred_fallthru
        _
    $region36: #{net_forward.7} parent=5 // pred_fallthru
      _
    %p560 = scmp.le.s32.totalorder 2, %s10
    // Predicated region
    $region41: #{net_forward.7} parent=5 // pred_check
      %p561 = pneg %p560
    $region42: #{net_forward.7} parent=5 // pred_check_branch
      %563 = sbr.rel (%p561) target = $region44
    $region43: #{net_forward.7} parent=5 // pred_region
      %s564 = ssub.s32 %s10, 2
      // Predicated region
      $region45: #{net_forward.7} parent=43 // pred_check
        %p565 = pneg %p128
      $region46: #{net_forward.7} parent=43 // pred_check_branch
        %567 = sbr.rel (%p565) target = $region48
      $region47: #{net_forward.7} parent=43 // pred_region
        %s568 = smul.u32 8, %s16
        %p569 = scmp.lt.s32.totalorder %s568, 15
        %s570 = scalar_select %p569, %s568, 15
        %s571 = smul.addr %s570, 4
        %s572 = scalar_lea.vmem %s4, %s571
      $region48: #{net_forward.7} parent=43 // pred_fallthru
        _
    $region44: #{net_forward.7} parent=5 // pred_fallthru
      _
  $region6: #{net_forward.7} parent=0 // loop_footer
    %s14 = sadd.s32 1, %s10
  $region7: #{net_forward.7} parent=0 // loop_footer_branch
    %9 = sbr.rel target = $region3
  $region8: #{net_forward.7} parent=0 // loop_exit
    _

// kernel: net_forward.11
$region0: #{net_forward.11}
  #allocation0 [shape = 'u32[]', space=smem, size = 0x4, offset = 0x4, fixed_abs, tag = 'smem constant byte address 0x4 - core index']
  #allocation1 [shape = 'u32[144,128]{1,0:T(1,128)}', space=vmem, size = 0x12000, scoped, tag = 'internal scratch']
  %s0 = inlined_call_operand.vmem [shape: bf16[128,128], index: 0, kind: input, shape index: {}]
  %s1 = inlined_call_operand.vmem [shape: f32[1,128], index: 1, kind: input, shape index: {}]
  %s2 = inlined_call_operand.vmem [shape: bf16[128,128], index: 2, kind: input, shape index: {}]
  %s3 = inlined_call_operand.vmem [shape: f32[1,128], index: 3, kind: input, shape index: {}]
  %s4 = inlined_call_operand.vmem [shape: f32[128,128], index: 4, kind: output, shape index: {}]
  %s5 = sld [smem:[#allocation0]]
  $region49: #{net_forward.11} parent=0
    _
  %s7 = ssub.s32 1, %s5
  %s8 = scalar_select 0, %s7, %s5
  loop: start=0, step=1, limit=4
  $region2: #{net_forward.11} parent=0 // loop_pre_header
    _
  $region3: #{net_forward.11} parent=0 // loop_header
    %s10 = sphi 0, %s14
    %p11 = scmp.ge.s32.totalorder %s10, 4
    %s20 = sphi 0, %s22
    %s23 = sphi 0, %s20
    %s24 = sphi 0, %s23
    %s40 = sphi 0, %s24
    %s44 = sphi 0, %s44
    %s46 = sphi 0, %s44
    %s47 = sphi 0, %s46
    %s61 = sphi 0, %s47
    %s65 = sphi 0, %s65
    %s67 = sphi 0, %s65
    %s68 = sphi 0, %s67
    %s82 = sphi 0, %s68
    %s86 = sphi 0, %s86
    %s88 = sphi 0, %s86
    %s89 = sphi 0, %s88
    %s103 = sphi 0, %s89
    %s109 = sphi 0, %s111
    %s112 = sphi 0, %s109
    %s113 = sphi 0, %s112
    %s129 = sphi 0, %s113
  $region4: #{net_forward.11} parent=0 // loop_header_branch
    %13 = sbr.rel (%p11) target = $region8
  $region5: #{net_forward.11} parent=0 // loop_body
    %s15 = ssub.s32 %s10, 1
    %s16 = ssub.s32 %s10, 2
    %s17 = sadd.s32 %s10, 1
    %s18 = ssub.s32 %s10, %s17
    %p19 = scmp.eq.s32.totalorder %s18, 0
    %s21 = sadd.s32 %s20, 1
    %s22 = scalar_select %p19, %s20, %s21
    %p25 = pneg %p19
    %p26 = scmp.eq.s32.totalorder %s10, 1
    %p27 = por %p25, %p26
    %p28 = scmp.ne.s32.totalorder %s20, %s23
    %p29 = scmp.eq.s32.totalorder %s10, 0
    %p30 = por %p28, %p29
    %p31 = scmp.ne.s32.totalorder %s20, %s23
    %p32 = scmp.eq.s32.totalorder %s15, 1
    %p33 = por %p31, %p32
    %p34 = scmp.ne.s32.totalorder %s23, %s24
    %p35 = scmp.eq.s32.totalorder %s15, 0
    %p36 = por %p34, %p35
    %p37 = scmp.ne.s32.totalorder %s23, %s24
    %p38 = scmp.eq.s32.totalorder %s16, 1
    %p39 = por %p37, %p38
    %p41 = scmp.ne.s32.totalorder %s24, %s40
    %p42 = scmp.eq.s32.totalorder %s16, 0
    %p43 = por %p41, %p42
    %s45 = sadd.s32 %s44, 1
    %p48 = scmp.eq.s32.totalorder %s10, 1
    %p49 = scmp.ne.s32.totalorder %s44, %s46
    %p50 = scmp.eq.s32.totalorder %s10, 0
    %p51 = por %p49, %p50
    %p52 = scmp.ne.s32.totalorder %s44, %s46
    %p53 = scmp.eq.s32.totalorder %s15, 1
    %p54 = por %p52, %p53
    %p55 = scmp.ne.s32.totalorder %s46, %s47
    %p56 = scmp.eq.s32.totalorder %s15, 0
    %p57 = por %p55, %p56
    %p58 = scmp.ne.s32.totalorder %s46, %s47
    %p59 = scmp.eq.s32.totalorder %s16, 1
    %p60 = por %p58, %p59
    %p62 = scmp.ne.s32.totalorder %s47, %s61
    %p63 = scmp.eq.s32.totalorder %s16, 0
    %p64 = por %p62, %p63
    %s66 = sadd.s32 %s65, 1
    %p69 = scmp.eq.s32.totalorder %s10, 1
    %p70 = scmp.ne.s32.totalorder %s65, %s67
    %p71 = scmp.eq.s32.totalorder %s10, 0
    %p72 = por %p70, %p71
    %p73 = scmp.ne.s32.totalorder %s65, %s67
    %p74 = scmp.eq.s32.totalorder %s15, 1
    %p75 = por %p73, %p74
    %p76 = scmp.ne.s32.totalorder %s67, %s68
    %p77 = scmp.eq.s32.totalorder %s15, 0
    %p78 = por %p76, %p77
    %p79 = scmp.ne.s32.totalorder %s67, %s68
    %p80 = scmp.eq.s32.totalorder %s16, 1
    %p81 = por %p79, %p80
    %p83 = scmp.ne.s32.totalorder %s68, %s82
    %p84 = scmp.eq.s32.totalorder %s16, 0
    %p85 = por %p83, %p84
    %s87 = sadd.s32 %s86, 1
    %p90 = scmp.eq.s32.totalorder %s10, 1
    %p91 = scmp.ne.s32.totalorder %s86, %s88
    %p92 = scmp.eq.s32.totalorder %s10, 0
    %p93 = por %p91, %p92
    %p94 = scmp.ne.s32.totalorder %s86, %s88
    %p95 = scmp.eq.s32.totalorder %s15, 1
    %p96 = por %p94, %p95
    %p97 = scmp.ne.s32.totalorder %s88, %s89
    %p98 = scmp.eq.s32.totalorder %s15, 0
    %p99 = por %p97, %p98
    %p100 = scmp.ne.s32.totalorder %s88, %s89
    %p101 = scmp.eq.s32.totalorder %s16, 1
    %p102 = por %p100, %p101
    %p104 = scmp.ne.s32.totalorder %s89, %s103
    %p105 = scmp.eq.s32.totalorder %s16, 0
    %p106 = por %p104, %p105
    %s107 = ssub.s32 %s10, %s17
    %p108 = scmp.eq.s32.totalorder %s107, 0
    %s110 = sadd.s32 %s109, 1
    %s111 = scalar_select %p108, %s109, %s110
    %p114 = pneg %p108
    %p115 = scmp.eq.s32.totalorder %s10, 1
    %p116 = por %p114, %p115
    %p117 = scmp.ne.s32.totalorder %s109, %s112
    %p118 = scmp.eq.s32.totalorder %s10, 0
    %p119 = por %p117, %p118
    %p120 = scmp.ne.s32.totalorder %s109, %s112
    %p121 = scmp.eq.s32.totalorder %s15, 1
    %p122 = por %p120, %p121
    %p123 = scmp.ne.s32.totalorder %s112, %s113
    %p124 = scmp.eq.s32.totalorder %s15, 0
    %p125 = por %p123, %p124
    %p126 = scmp.ne.s32.totalorder %s112, %s113
    %p127 = scmp.eq.s32.totalorder %s16, 1
    %p128 = por %p126, %p127
    %p130 = scmp.ne.s32.totalorder %s113, %s129
    %p131 = scmp.eq.s32.totalorder %s16, 0
    %p132 = por %p130, %p131
    %p133 = scmp.le.s32.totalorder 1, %s10
    %p134 = scmp.lt.s32.totalorder %s10, 3
    %p135 = pnand %p133, %p134
    %p136 = pneg %p135
    // Predicated region
    $region9: #{net_forward.11} parent=5 // pred_check
      _
    $region10: #{net_forward.11} parent=5 // pred_check_branch
      %138 = sbr.rel (%p135) target = $region12
    $region11: #{net_forward.11} parent=5 // pred_region
      %s139 = ssub.s32 %s10, 1
      // Predicated region
      $region13: #{net_forward.11} parent=11 // pred_check
        %p140 = pneg %p57
      $region14: #{net_forward.11} parent=11 // pred_check_branch
        %142 = sbr.rel (%p140) target = $region16
      $region15: #{net_forward.11} parent=11 // pred_region
        _
      $region16: #{net_forward.11} parent=11 // pred_fallthru
        _
      // Predicated region
      $region17: #{net_forward.11} parent=11 // pred_check
        %p143 = pneg %p78
      $region18: #{net_forward.11} parent=11 // pred_check_branch
        %145 = sbr.rel (%p143) target = $region20
      $region19: #{net_forward.11} parent=11 // pred_region
        _
      $region20: #{net_forward.11} parent=11 // pred_fallthru
        _
      // Predicated region
      $region21: #{net_forward.11} parent=11 // pred_check
        %p146 = pneg %p99
      $region22: #{net_forward.11} parent=11 // pred_check_branch
        %148 = sbr.rel (%p146) target = $region24
      $region23: #{net_forward.11} parent=11 // pred_region
        _
      $region24: #{net_forward.11} parent=11 // pred_fallthru
        _
    $region12: #{net_forward.11} parent=5 // pred_fallthru
      _
    %p149 = scmp.lt.s32.totalorder %s10, 2
    // Predicated region
    $region25: #{net_forward.11} parent=5 // pred_check
      %p150 = pneg %p149
    $region26: #{net_forward.11} parent=5 // pred_check_branch
      %152 = sbr.rel (%p150) target = $region28
    $region27: #{net_forward.11} parent=5 // pred_region
      // Predicated region
      $region29: #{net_forward.11} parent=27 // pred_check
        %p153 = pneg %p30
      $region30: #{net_forward.11} parent=27 // pred_check_branch
        %155 = sbr.rel (%p153) target = $region32
      $region31: #{net_forward.11} parent=27 // pred_region
        %s156 = smul.u32 8, %s10
        %p157 = scmp.lt.s32.totalorder %s156, 15
        %s158 = scalar_select %p157, %s156, 15
        %s159 = smul.addr %s158, 4
        %s160 = scalar_lea.vmem %s0, %s159
        %s161 = smul.u32 8, %s10
      $region32: #{net_forward.11} parent=27 // pred_fallthru
        _
    $region28: #{net_forward.11} parent=5 // pred_fallthru
      _
    %p162 = scmp.le.s32.totalorder 1, %s10
    %p163 = scmp.lt.s32.totalorder %s10, 3
    %p164 = pnand %p162, %p163
    %p165 = pneg %p164
    // Predicated region
    $region33: #{net_forward.11} parent=5 // pred_check
      _
    $region34: #{net_forward.11} parent=5 // pred_check_branch
      %167 = sbr.rel (%p164) target = $region36
    $region35: #{net_forward.11} parent=5 // pred_region
      %s168 = ssub.s32 %s10, 1
      %s169 = smul.u32 8, %s15
      %p170 = scmp.lt.s32.totalorder %s169, 15
      %s171 = scalar_select %p170, %s169, 15
      %s172 = smul.addr %s171, 4
      %s173 = scalar_lea.vmem %s0, %s172
      %p174 = pneg %p36
      %p175 = pneg %p33
      %p176 = pneg %p57
      %p177 = pneg %p54
      %p178 = pneg %p78
      %p179 = pneg %p75
      %p180 = pneg %p99
      %p181 = pneg %p96
      %p182 = pneg %p125
      %p183 = pneg %p122
      %s184 = smul.u32 8, %s15
      %p185 = scmp.lt.s32.totalorder %s184, 15
      %s186 = scalar_select %p185, %s184, 15
      %s187 = smul.addr %s186, 8
      %s188 = scalar_lea.vmem %s4, %s187
      %s189 = smul.u32 8, %s15
      %p190 = scmp.lt.s32.totalorder %s189, 15
      %s191 = scalar_select %p190, %s189, 15
      %s192 = smul.addr %s191, 4
      %s193 = scalar_lea.vmem %s0, %s192
      %s194 = smul.u32 8, %s15
      %s195 = smul.u32 8, %s15
      %p196 = scmp.lt.s32.totalorder %s195, 15
      %s197 = scalar_select %p196, %s195, 15
      %s198 = smul.addr %s197, 8
      %s199 = scalar_lea.vmem %s4, %s198
      %s200 = smul.u32 8, %s15
      %v202 = vld [vmem:[%s193] sm:$0xf]
      %v203 = vld [vmem:[%s193 + $0x4] sm:$0xf]
      %v204 = vld [vmem:[%s193 + $0x8] sm:$0xf]
      %v205 = vld [vmem:[%s193 + $0xc] sm:$0xf]
      %v206 = vld [vmem:[%s193 + $0x10] sm:$0xf]
      %v207 = vld [vmem:[%s193 + $0x14] sm:$0xf]
      %v208 = vld [vmem:[%s193 + $0x18] sm:$0xf]
      %v209 = vld [vmem:[%s193 + $0x1c] sm:$0xf]
      %v210 = vld [vmem:[%s1] sm:$0x1]
      %v211 = vld [vmem:[%s2] sm:$0xf]
      %v212 = vld [vmem:[%s2 + $0x4] sm:$0xf]
      %v213 = vld [vmem:[%s2 + $0x8] sm:$0xf]
      %v214 = vld [vmem:[%s2 + $0xc] sm:$0xf]
      %v215 = vld [vmem:[%s2 + $0x10] sm:$0xf]
      %v216 = vld [vmem:[%s2 + $0x14] sm:$0xf]
      %v217 = vld [vmem:[%s2 + $0x18] sm:$0xf]
      %v218 = vld [vmem:[%s2 + $0x1c] sm:$0xf]
      %v219 = vld [vmem:[%s2 + $0x20] sm:$0xf]
      %v220 = vld [vmem:[%s2 + $0x24] sm:$0xf]
      %v221 = vld [vmem:[%s2 + $0x28] sm:$0xf]
      %v222 = vld [vmem:[%s2 + $0x2c] sm:$0xf]
      %v223 = vld [vmem:[%s2 + $0x30] sm:$0xf]
      %v224 = vld [vmem:[%s2 + $0x34] sm:$0xf]
      %v225 = vld [vmem:[%s2 + $0x38] sm:$0xf]
      %v226 = vld [vmem:[%s2 + $0x3c] sm:$0xf]
      %v227 = vunpack.c.l.bf16 %v202
      %v228 = vunpack.c.l.bf16 %v203
      %v229 = vunpack.c.l.bf16 %v204
      %v230 = vunpack.c.l.bf16 %v205
      %v231 = vunpack.c.l.bf16 %v206
      %v232 = vunpack.c.l.bf16 %v207
      %v233 = vunpack.c.l.bf16 %v208
      %v234 = vunpack.c.l.bf16 %v209
      %v236 = vlaneseq
      %v237 = vshrl.u32 %v236, 7
      %v238 = vsub.s32 0, %v237
      %v239 = vrot.slane %v210, %v238
      %v241 = vadd.f32 %v227, %v239
      %v242 = vadd.f32 %v228, %v239
      %v243 = vadd.f32 %v229, %v239
      %v244 = vadd.f32 %v230, %v239
      %v245 = vadd.f32 %v231, %v239
      %v246 = vadd.f32 %v232, %v239
      %v247 = vadd.f32 %v233, %v239
      %v248 = vadd.f32 %v234, %v239
      %v249 = vmax.f32 %v241, 0.0
      %v250 = vmax.f32 %v242, 0.0
      %v251 = vmax.f32 %v243, 0.0
      %v252 = vmax.f32 %v244, 0.0
      %v253 = vmax.f32 %v245, 0.0
      %v254 = vmax.f32 %v246, 0.0
      %v255 = vmax.f32 %v247, 0.0
      %v256 = vmax.f32 %v248, 0.0
      %v257 = vpack.c.bf16 %v250, %v249
      %v258 = vpack.c.bf16 %v252, %v251
      %v259 = vpack.c.bf16 %v254, %v253
      %v260 = vpack.c.bf16 %v256, %v255
      %v261 = vld [vmem:[%s3] sm:$0x1]
      %v263 = vlaneseq
      %v264 = vshrl.u32 %v263, 7
      %v265 = vsub.s32 0, %v264
      %v266 = vrot.slane %v261, %v265
      %v284 = vunpack.c.l.b16 %v211
      %v285 = vunpack.c.l.b16 %v212
      %v286 = vunpack.c.l.b16 %v213
      %v287 = vunpack.c.l.b16 %v214
      %v288 = vunpack.c.l.b16 %v215
      %v289 = vunpack.c.l.b16 %v216
      %v290 = vunpack.c.l.b16 %v217
      %v291 = vunpack.c.l.b16 %v218
      %v292 = vunpack.c.l.b16 %v219
      %v293 = vunpack.c.l.b16 %v220
      %v294 = vunpack.c.l.b16 %v221
      %v295 = vunpack.c.l.b16 %v222
      %v296 = vunpack.c.l.b16 %v223
      %v297 = vunpack.c.l.b16 %v224
      %v298 = vunpack.c.l.b16 %v225
      %v299 = vunpack.c.l.b16 %v226
      %v300 = vpack.c.b16 %v285, %v284
      %v301 = vpack.c.b16 %v287, %v286
      %v302 = vpack.c.b16 %v289, %v288
      %v303 = vpack.c.b16 %v291, %v290
      %v304 = vpack.c.b16 %v293, %v292
      %v305 = vpack.c.b16 %v295, %v294
      %v306 = vpack.c.b16 %v297, %v296
      %v307 = vpack.c.b16 %v299, %v298
      %316 = vmatprep.subr.bf16.mxu0 0
      %317 = vmatpush1.bf16.msra.mxu0 %v300
      %318 = vmatprep.subr.bf16.mxu0 0
      %319 = vmatpush1.bf16.msra.mxu0 %v301
      %320 = vmatprep.subr.bf16.mxu0 0
      %321 = vmatpush1.bf16.msra.mxu0 %v302
      %322 = vmatprep.subr.bf16.mxu0 0
      %323 = vmatpush1.bf16.msra.mxu0 %v303
      %324 = vmatprep.subr.bf16.mxu0 0
      %325 = vmatpush1.bf16.msra.mxu0 %v304
      %326 = vmatprep.subr.bf16.mxu0 0
      %327 = vmatpush1.bf16.msra.mxu0 %v305
      %328 = vmatprep.subr.bf16.mxu0 0
      %329 = vmatpush1.bf16.msra.mxu0 %v306
      %330 = vmatprep.subr.bf16.mxu0 0
      %331 = vmatpush1.bf16.msra.mxu0 %v307
      %332 = vmatprep.subr.bf16.mxu0 0
      %333 = vmatpush1.bf16.msra.mxu0 0
      %334 = vmatprep.subr.bf16.mxu0 0
      %335 = vmatpush1.bf16.msra.mxu0 0
      %336 = vmatprep.subr.bf16.mxu0 0
      %337 = vmatpush1.bf16.msra.mxu0 0
      %338 = vmatprep.subr.bf16.mxu0 0
      %339 = vmatpush1.bf16.msra.mxu0 0
      %340 = vmatprep.subr.bf16.mxu0 0
      %341 = vmatpush1.bf16.msra.mxu0 0
      %342 = vmatprep.subr.bf16.mxu0 0
      %343 = vmatpush1.bf16.msra.mxu0 0
      %344 = vmatprep.subr.bf16.mxu0 0
      %345 = vmatpush1.bf16.msra.mxu0 0
      %346 = vmatprep.subr.bf16.mxu0 0
      %347 = vmatpush1.bf16.msra.mxu0 0
      %348 = vmatprep.mubr.bf16.mxu0 0
      %349 = vmatmul.mubr.bf16.gmra.mrb[0].mxu0 %v257
      %v350 = vpop.f32.mrb[0].mxu0
      %v351 = vadd.f32 %v266, %v350
      %v352 = vpop.f32.mrb[0].mxu0
      %v353 = vpop.f32.mrb[0].mxu0
      %v354 = vadd.f32 %v266, %v353
      %v355 = vpop.f32.mrb[0].mxu0
      %356 = vmatprep.mubr.bf16.mxu0 0
      %357 = vmatmul.mubr.bf16.gmra.mrb[0].mxu0 %v258
      %v358 = vpop.f32.mrb[0].mxu0
      %v359 = vadd.f32 %v266, %v358
      %v360 = vpop.f32.mrb[0].mxu0
      %v361 = vpop.f32.mrb[0].mxu0
      %v362 = vadd.f32 %v266, %v361
      %v363 = vpop.f32.mrb[0].mxu0
      %364 = vmatprep.mubr.bf16.mxu0 0
      %365 = vmatmul.mubr.bf16.gmra.mrb[0].mxu0 %v259
      %v366 = vpop.f32.mrb[0].mxu0
      %v367 = vadd.f32 %v266, %v366
      %v368 = vpop.f32.mrb[0].mxu0
      %v369 = vpop.f32.mrb[0].mxu0
      %v370 = vadd.f32 %v266, %v369
      %v371 = vpop.f32.mrb[0].mxu0
      %372 = vmatprep.mubr.bf16.mxu0 0
      %373 = vmatmul.mubr.bf16.gmra.mrb[0].mxu0 %v260
      %v374 = vpop.f32.mrb[0].mxu0
      %v375 = vadd.f32 %v266, %v374
      %v376 = vpop.f32.mrb[0].mxu0
      %v377 = vpop.f32.mrb[0].mxu0
      %v378 = vadd.f32 %v266, %v377
      %v379 = vpop.f32.mrb[0].mxu0
      %380 = vdwg.mxu0
      %381 = vmax.xlane.f32.xlu0 %v351
      %v382 = vpop.xlane.xlu0 %381
      %383 = vmax.xlane.f32.xlu0 %v354
      %v384 = vpop.xlane.xlu0 %383
      %385 = vmax.xlane.f32.xlu0 %v359
      %v386 = vpop.xlane.xlu0 %385
      %387 = vmax.xlane.f32.xlu0 %v362
      %v388 = vpop.xlane.xlu0 %387
      %389 = vmax.xlane.f32.xlu0 %v367
      %v390 = vpop.xlane.xlu0 %389
      %391 = vmax.xlane.f32.xlu0 %v370
      %v392 = vpop.xlane.xlu0 %391
      %393 = vmax.xlane.f32.xlu0 %v375
      %v394 = vpop.xlane.xlu0 %393
      %395 = vmax.xlane.f32.xlu0 %v378
      %v396 = vpop.xlane.xlu0 %395
      %v397 = vsub.f32 %v351, %v382
      %v398 = vsub.f32 %v354, %v384
      %v399 = vsub.f32 %v359, %v386
      %v400 = vsub.f32 %v362, %v388
      %v401 = vsub.f32 %v367, %v390
      %v402 = vsub.f32 %v370, %v392
      %v403 = vsub.f32 %v375, %v394
      %v404 = vsub.f32 %v378, %v396
      %v405 = vmul.f32 %v397, 1.442695
      %v406 = vpow.pop %v405
      %v407 = vmul.f32 %v398, 1.442695
      %v408 = vpow.pop %v407
      %v409 = vmul.f32 %v399, 1.442695
      %v410 = vpow.pop %v409
      %v411 = vmul.f32 %v400, 1.442695
      %v412 = vpow.pop %v411
      %v413 = vmul.f32 %v401, 1.442695
      %v414 = vpow.pop %v413
      %v415 = vmul.f32 %v402, 1.442695
      %v416 = vpow.pop %v415
      %v417 = vmul.f32 %v403, 1.442695
      %v418 = vpow.pop %v417
      %v419 = vmul.f32 %v404, 1.442695
      %v420 = vpow.pop %v419
      %421 = vadd.xlane.f32.xlu0 %v406
      %v422 = vpop.xlane.xlu0 %421
      %423 = vadd.xlane.f32.xlu0 %v408
      %v424 = vpop.xlane.xlu0 %423
      %425 = vadd.xlane.f32.xlu0 %v410
      %v426 = vpop.xlane.xlu0 %425
      %427 = vadd.xlane.f32.xlu0 %v412
      %v428 = vpop.xlane.xlu0 %427
      %429 = vadd.xlane.f32.xlu0 %v414
      %v430 = vpop.xlane.xlu0 %429
      %431 = vadd.xlane.f32.xlu0 %v416
      %v432 = vpop.xlane.xlu0 %431
      %433 = vadd.xlane.f32.xlu0 %v418
      %v434 = vpop.xlane.xlu0 %433
      %435 = vadd.xlane.f32.xlu0 %v420
      %v436 = vpop.xlane.xlu0 %435
      %v437 = vlog2.pop %v422
      %v438 = vmul.f32 %v437, 0.6931472
      %v439 = vlog2.pop %v424
      %v440 = vmul.f32 %v439, 0.6931472
      %v441 = vlog2.pop %v426
      %v442 = vmul.f32 %v441, 0.6931472
      %v443 = vlog2.pop %v428
      %v444 = vmul.f32 %v443, 0.6931472
      %v445 = vlog2.pop %v430
      %v446 = vmul.f32 %v445, 0.6931472
      %v447 = vlog2.pop %v432
      %v448 = vmul.f32 %v447, 0.6931472
      %v449 = vlog2.pop %v434
      %v450 = vmul.f32 %v449, 0.6931472
      %v451 = vlog2.pop %v436
      %v452 = vmul.f32 %v451, 0.6931472
      %v453 = vsub.f32 %v397, %v438
      %v454 = vsub.f32 %v398, %v440
      %v455 = vsub.f32 %v399, %v442
      %v456 = vsub.f32 %v400, %v444
      %v457 = vsub.f32 %v401, %v446
      %v458 = vsub.f32 %v402, %v448
      %v459 = vsub.f32 %v403, %v450
      %v460 = vsub.f32 %v404, %v452
      %461 = vst [vmem:[%s199] sm:$0xff] %v453
      %462 = vst [vmem:[%s199 + $0x8] sm:$0xff] %v454
      %463 = vst [vmem:[%s199 + $0x10] sm:$0xff] %v455
      %464 = vst [vmem:[%s199 + $0x18] sm:$0xff] %v456
      %465 = vst [vmem:[%s199 + $0x20] sm:$0xff] %v457
      %466 = vst [vmem:[%s199 + $0x28] sm:$0xff] %v458
      %467 = vst [vmem:[%s199 + $0x30] sm:$0xff] %v459
      %468 = vst [vmem:[%s199 + $0x38] sm:$0xff] %v460
      %s469 = smul.u32 8, %s15
      %p470 = scmp.lt.s32.totalorder %s469, 15
      %s471 = scalar_select %p470, %s469, 15
      %s472 = smul.addr %s471, 8
      %s473 = scalar_lea.vmem %s4, %s472
      // Predicated region
      $region37: #{net_forward.11} parent=35 // pred_check
        %p474 = pneg %p122
      $region38: #{net_forward.11} parent=35 // pred_check_branch
        %476 = sbr.rel (%p474) target = $region40
      $region39: #{net_forward.11} parent=35 // pred_region
        %s477 = smul.u32 8, %s15
      $region40: #{net_forward.11} parent=35 // pred_fallthru
        _
    $region36: #{net_forward.11} parent=5 // pred_fallthru
      _
    %p478 = scmp.le.s32.totalorder 2, %s10
    // Predicated region
    $region41: #{net_forward.11} parent=5 // pred_check
      %p479 = pneg %p478
    $region42: #{net_forward.11} parent=5 // pred_check_branch
      %481 = sbr.rel (%p479) target = $region44
    $region43: #{net_forward.11} parent=5 // pred_region
      %s482 = ssub.s32 %s10, 2
      // Predicated region
      $region45: #{net_forward.11} parent=43 // pred_check
        %p483 = pneg %p128
      $region46: #{net_forward.11} parent=43 // pred_check_branch
        %485 = sbr.rel (%p483) target = $region48
      $region47: #{net_forward.11} parent=43 // pred_region
        %s486 = smul.u32 8, %s16
        %p487 = scmp.lt.s32.totalorder %s486, 15
        %s488 = scalar_select %p487, %s486, 15
        %s489 = smul.addr %s488, 8
        %s490 = scalar_lea.vmem %s4, %s489
      $region48: #{net_forward.11} parent=43 // pred_fallthru
        _
    $region44: #{net_forward.11} parent=5 // pred_fallthru
      _
  $region6: #{net_forward.11} parent=0 // loop_footer
    %s14 = sadd.s32 1, %s10
  $region7: #{net_forward.11} parent=0 // loop_footer_branch
    %9 = sbr.rel target = $region3
  $region8: #{net_forward.11} parent=0 // loop_exit
    _

</llo_original>
